<compile_context>
chip_gen: v7x
topology: tpu7x:2x2x1
jax: 0.10.0
libtpu: 0.0.40
codegen_flags: <defaults>
</compile_context>

<pallas_src>
import numpy as np
import jax
import jax.numpy as jnp
from jax.experimental import pallas as pl
from jax.experimental.pallas import tpu as pltpu

# ----- small, DQN-consistent config -------------------------------------------------
BATCH = 2
C_IN = 4                     # input_dims[0] * framestack (framestack = 1)
H = W = 16
C_OUT = 8
K = 3
HO, WO = H - K + 1, W - K + 1            # 14, 14 (VALID conv, stride 1)
S = HO * WO                              # 196 spatial positions
KK = C_IN * K * K                        # 36 patch depth
CONV_OUT = C_OUT * S                     # 1568
HIDDEN = 32                              # args.hidden_size
PHI_DIMS = 4                             # args.phi_dims
N_ACTIONS = 4
N_POLICIES = 2
PSI_OUT = PHI_DIMS * N_ACTIONS * N_POLICIES   # 32


# ----- fused kernel: conv(matmul) + ReLU + phi + psi MLP + q -------------------------
def dqn_kernel(pt_ref, wc_ref, bc_ref, pw_ref, pb_ref,
               w1_ref, b1_ref, w2_ref, b2_ref, wq_ref,
               psi_ref, q_ref):
    # pt_ref: (B, KK, S)          f32   im2col patches, transposed per image
    # wc_ref: (C_OUT, KK)         f32   conv weight
    # bc_ref: (C_OUT, 1)          f32   conv bias (broadcasts over lanes)
    # pw_ref: (C_OUT, S, HIDDEN)  bf16  phi weight in NCHW-flatten order
    # pb_ref: (1, HIDDEN)         f32   phi bias
    # w1/b1, w2/b2:               f32   psi MLP
    # wq_ref: (PSI_OUT, P*A)      f32   fused w-selection matrix
    wc = wc_ref[...]
    bc = bc_ref[...]

    # conv + ReLU per image on the MXU: (C_OUT, KK) @ (KK, S) -> (C_OUT, S)
    conv = [
        jnp.maximum(
            jnp.dot(wc, pt_ref[b], preferred_element_type=jnp.float32) + bc, 0.0)
        for b in range(BATCH)
    ]

    # phi, accumulated per conv output channel with the whole batch per dot:
    #   z[b, h] = phi_b[h] + sum_{o,s} conv[b][o, s] * phi_w[o*S + s, h]
    acc = jnp.zeros((BATCH, HIDDEN), jnp.float32)
    for o in range(C_OUT):
        a_o = jnp.concatenate([conv[b][o:o + 1, :] for b in range(BATCH)],
                              axis=0).astype(jnp.bfloat16)               # (B, S)
        acc = acc + jnp.dot(a_o, pw_ref[o], preferred_element_type=jnp.float32)
    z = acc + pb_ref[...]                                                 # (B, HIDDEN)

    # psi MLP, whole batch at once
    h = jnp.maximum(
        jnp.dot(z, w1_ref[...], preferred_element_type=jnp.float32)
        + b1_ref[...], 0.0)
    psi = (jnp.dot(h, w2_ref[...], preferred_element_type=jnp.float32)
           + b2_ref[...])                                                 # (B, PSI_OUT)
    psi_ref[...] = psi

    # q[b, a] = max_p sum_f psi[b, p, a, f] * w[f]
    qpa = jnp.dot(psi, wq_ref[...], preferred_element_type=jnp.float32)   # (B, P*A)
    q = qpa[:, 0:N_ACTIONS]
    for p in range(1, N_POLICIES):
        q = jnp.maximum(q, qpa[:, p * N_ACTIONS:(p + 1) * N_ACTIONS])
    q_ref[...] = q


def _vmem():
    return pl.BlockSpec(memory_space=pltpu.MemorySpace.VMEM)


_dqn_call = pl.pallas_call(
    dqn_kernel,
    out_shape=(
        jax.ShapeDtypeStruct((BATCH, PSI_OUT), jnp.float32),
        jax.ShapeDtypeStruct((BATCH, N_ACTIONS), jnp.float32),
    ),
    in_specs=[_vmem() for _ in range(10)],
    out_specs=(_vmem(), _vmem()),
)


# ----- wrapper-side glue (im2col, param re-layout, w-selection matrix) ---------------
def _im2col_t(x):
    # (B, C_IN, H, W) -> (B, C_IN*K*K, HO*WO);  row index k = c*K*K + ki*K + kj
    cols = []
    for ki in range(K):
        for kj in range(K):
            cols.append(x[:, :, ki:ki + HO, kj:kj + WO].reshape(BATCH, C_IN, S))
    p = jnp.stack(cols, axis=2)                  # (B, C_IN, K*K, S)
    return p.reshape(BATCH, KK, S)


def _build_wq_mask():
    # mask[(p*A + a)*F + f, p*A + a] = 1  -> wq = mask * tile(w) reproduces
    # q[b, p*A + a] = sum_f psi[b, p, a, f] * w[f]
    m = np.zeros((PSI_OUT, N_POLICIES * N_ACTIONS), np.float32)
    for p in range(N_POLICIES):
        for a in range(N_ACTIONS):
            for f in range(PHI_DIMS):
                m[(p * N_ACTIONS + a) * PHI_DIMS + f, p * N_ACTIONS + a] = 1.0
    return jnp.asarray(m)


_WQ_MASK = _build_wq_mask()


def prepare_params(params):
    # One-time host-side re-layouts; no change to the math.
    return {
        "conv_w": params["conv_w_flat"].reshape(C_OUT, KK),          # (8, 36)
        "conv_b": params["conv_b"].reshape(C_OUT, 1),                # (8, 1)
        "phi_w3": params["phi_w"].reshape(C_OUT, S, HIDDEN).astype(jnp.bfloat16),
        "phi_b": params["phi_b"],
        "psi1_w": params["psi1_w"], "psi1_b": params["psi1_b"],
        "psi2_w": params["psi2_w"], "psi2_b": params["psi2_b"],
    }


@jax.jit
def dqn_forward(x, prep, w_vec):
    patches_t = _im2col_t(x)
    wq = _WQ_MASK * jnp.tile(w_vec, N_POLICIES * N_ACTIONS)[:, None]   # (32, 8)
    psi_flat, q = _dqn_call(
        patches_t,
        prep["conv_w"], prep["conv_b"],
        prep["phi_w3"], prep["phi_b"],
        prep["psi1_w"], prep["psi1_b"],
        prep["psi2_w"], prep["psi2_b"],
        wq)
    psi = psi_flat.reshape(BATCH, N_POLICIES, N_ACTIONS, PHI_DIMS)
    return q, psi


# ----- pure-JAX f32 reference for verification ---------------------------------------
def reference(x, params, w_vec):
    conv_w = params["conv_w_flat"].reshape(C_OUT, C_IN, K, K)
    out = jax.lax.conv_general_dilated(
        x, conv_w, window_strides=(1, 1), padding="VALID",
        dimension_numbers=("NCHW", "OIHW", "NCHW"))
    out = jnp.maximum(out + params["conv_b"][None, :, None, None], 0.0)
    flat = out.reshape(BATCH, -1)
    z = flat @ params["phi_w"] + params["phi_b"][0]
    h = jnp.maximum(z @ params["psi1_w"] + params["psi1_b"][0], 0.0)
    psi = (h @ params["psi2_w"] + params["psi2_b"][0]).reshape(
        BATCH, N_POLICIES, N_ACTIONS, PHI_DIMS)
    q = (psi * w_vec[None, None, None, :]).sum(-1).max(axis=1)
    return q, psi


if __name__ == "__main__":
    key = jax.random.PRNGKey(0)
    ks = jax.random.split(key, 10)

    x = jax.random.normal(ks[0], (BATCH, C_IN, H, W), jnp.float32)

    params = {
        "conv_w_flat": jax.random.normal(ks[1], (C_OUT * C_IN * K * K,), jnp.float32)
                       * (1.0 / np.sqrt(C_IN * K * K)),
        "conv_b": jax.random.normal(ks[2], (C_OUT,), jnp.float32) * 0.1,
        "phi_w": jax.random.normal(ks[3], (CONV_OUT, HIDDEN), jnp.float32)
                 * (1.0 / np.sqrt(CONV_OUT)),
        "phi_b": jax.random.normal(ks[4], (1, HIDDEN), jnp.float32) * 0.1,
        "psi1_w": jax.random.normal(ks[5], (HIDDEN, HIDDEN), jnp.float32)
                  * (1.0 / np.sqrt(HIDDEN)),
        "psi1_b": jax.random.normal(ks[6], (1, HIDDEN), jnp.float32) * 0.1,
        "psi2_w": jax.random.normal(ks[7], (HIDDEN, PSI_OUT), jnp.float32)
                  * (1.0 / np.sqrt(HIDDEN)),
        "psi2_b": jax.random.normal(ks[8], (1, PSI_OUT), jnp.float32) * 0.1,
    }
    w_vec = jax.random.normal(ks[9], (PHI_DIMS,), jnp.float32)

    prep = prepare_params(params)

    q, psi = dqn_forward(x, prep, w_vec)
    jax.block_until_ready((q, psi))

    assert q.shape == (BATCH, N_ACTIONS)
    assert psi.shape == (BATCH, N_POLICIES, N_ACTIONS, PHI_DIMS)

    q_ref, psi_ref = reference(x, params, w_vec)
    np.testing.assert_allclose(np.asarray(psi), np.asarray(psi_ref), rtol=5e-2, atol=5e-2)
    np.testing.assert_allclose(np.asarray(q), np.asarray(q_ref), rtol=5e-2, atol=5e-2)

    print("KERNEL_OK")
</pallas_src>

<mosaic_0001>
module attributes {stable_mosaic.version = 11 : i64} {
  func.func @dqn_kernel(%arg0: memref<2x36x196xf32, #tpu.memory_space<vmem>>, %arg1: memref<8x36xf32, #tpu.memory_space<vmem>>, %arg2: memref<8x1xf32, #tpu.memory_space<vmem>>, %arg3: memref<8x196x32xbf16, #tpu.memory_space<vmem>>, %arg4: memref<1x32xf32, #tpu.memory_space<vmem>>, %arg5: memref<32x32xf32, #tpu.memory_space<vmem>>, %arg6: memref<1x32xf32, #tpu.memory_space<vmem>>, %arg7: memref<32x32xf32, #tpu.memory_space<vmem>>, %arg8: memref<1x32xf32, #tpu.memory_space<vmem>>, %arg9: memref<32x8xf32, #tpu.memory_space<vmem>>, %arg10: memref<2x32xf32, #tpu.memory_space<vmem>>, %arg11: memref<2x4xf32, #tpu.memory_space<vmem>>) attributes {dimension_semantics = [], scalar_prefetch = 0 : i64, scratch_operands = 0 : i64, tpu.core_type = #tpu.core_type<tc>} {
    %c0 = arith.constant 0 : index
    %c0_0 = arith.constant 0 : index
    %0 = vector.load %arg1[%c0, %c0_0] : memref<8x36xf32, #tpu.memory_space<vmem>>, vector<8x36xf32>
    %c0_1 = arith.constant 0 : index
    %c0_2 = arith.constant 0 : index
    %1 = vector.load %arg2[%c0_1, %c0_2] : memref<8x1xf32, #tpu.memory_space<vmem>>, vector<8x1xf32>
    %c0_3 = arith.constant 0 : index
    %c0_4 = arith.constant 0 : index
    %c0_5 = arith.constant 0 : index
    %2 = vector.load %arg0[%c0_3, %c0_4, %c0_5] : memref<2x36x196xf32, #tpu.memory_space<vmem>>, vector<1x36x196xf32>
    %3 = vector.shape_cast %2 : vector<1x36x196xf32> to vector<36x196xf32>
    %cst = arith.constant dense<0.000000e+00> : vector<8x196xf32>
    %4 = tpu.matmul %0, %3, %cst {dimension_numbers = #tpu.dot_dimension_numbers<[1], [0], [0], [1], [0, 0, 1, 1], [], []>} : vector<8x36xf32>, vector<36x196xf32>, vector<8x196xf32> -> vector<8x196xf32>
    %5 = vector.broadcast %1 : vector<8x1xf32> to vector<8x196xf32>
    %6 = arith.addf %4, %5 : vector<8x196xf32>
    %cst_6 = arith.constant 0.000000e+00 : f32
    %7 = vector.broadcast %cst_6 : f32 to vector<8x196xf32>
    %8 = arith.maximumf %6, %7 : vector<8x196xf32>
    %c1 = arith.constant 1 : index
    %c0_7 = arith.constant 0 : index
    %c0_8 = arith.constant 0 : index
    %9 = vector.load %arg0[%c1, %c0_7, %c0_8] : memref<2x36x196xf32, #tpu.memory_space<vmem>>, vector<1x36x196xf32>
    %10 = vector.shape_cast %9 : vector<1x36x196xf32> to vector<36x196xf32>
    %cst_9 = arith.constant dense<0.000000e+00> : vector<8x196xf32>
    %11 = tpu.matmul %0, %10, %cst_9 {dimension_numbers = #tpu.dot_dimension_numbers<[1], [0], [0], [1], [0, 0, 1, 1], [], []>} : vector<8x36xf32>, vector<36x196xf32>, vector<8x196xf32> -> vector<8x196xf32>
    %12 = vector.broadcast %1 : vector<8x1xf32> to vector<8x196xf32>
    %13 = arith.addf %11, %12 : vector<8x196xf32>
    %cst_10 = arith.constant 0.000000e+00 : f32
    %14 = vector.broadcast %cst_10 : f32 to vector<8x196xf32>
    %15 = arith.maximumf %13, %14 : vector<8x196xf32>
    %cst_11 = arith.constant 0.000000e+00 : f32
    %16 = vector.broadcast %cst_11 : f32 to vector<2x32xf32>
    %17 = vector.extract_strided_slice %8 {offsets = [0, 0], sizes = [1, 196], strides = [1, 1]} : vector<8x196xf32> to vector<1x196xf32>
    %18 = vector.extract_strided_slice %15 {offsets = [0, 0], sizes = [1, 196], strides = [1, 1]} : vector<8x196xf32> to vector<1x196xf32>
    %19 = tpu.concatenate %17, %18 in 0 : vector<1x196xf32>, vector<1x196xf32> -> vector<2x196xf32>
    %20 = arith.truncf %19 : vector<2x196xf32> to vector<2x196xbf16>
    %c0_12 = arith.constant 0 : index
    %c0_13 = arith.constant 0 : index
    %c0_14 = arith.constant 0 : index
    %21 = vector.load %arg3[%c0_12, %c0_13, %c0_14] : memref<8x196x32xbf16, #tpu.memory_space<vmem>>, vector<1x196x32xbf16>
    %22 = vector.shape_cast %21 : vector<1x196x32xbf16> to vector<196x32xbf16>
    %cst_15 = arith.constant dense<0.000000e+00> : vector<2x32xf32>
    %23 = tpu.matmul %20, %22, %cst_15 {dimension_numbers = #tpu.dot_dimension_numbers<[1], [0], [0], [1], [0, 0, 1, 1], [], []>} : vector<2x196xbf16>, vector<196x32xbf16>, vector<2x32xf32> -> vector<2x32xf32>
    %24 = arith.addf %16, %23 : vector<2x32xf32>
    %25 = vector.extract_strided_slice %8 {offsets = [1, 0], sizes = [1, 196], strides = [1, 1]} : vector<8x196xf32> to vector<1x196xf32>
    %26 = vector.extract_strided_slice %15 {offsets = [1, 0], sizes = [1, 196], strides = [1, 1]} : vector<8x196xf32> to vector<1x196xf32>
    %27 = tpu.concatenate %25, %26 in 0 : vector<1x196xf32>, vector<1x196xf32> -> vector<2x196xf32>
    %28 = arith.truncf %27 : vector<2x196xf32> to vector<2x196xbf16>
    %c1_16 = arith.constant 1 : index
    %c0_17 = arith.constant 0 : index
    %c0_18 = arith.constant 0 : index
    %29 = vector.load %arg3[%c1_16, %c0_17, %c0_18] : memref<8x196x32xbf16, #tpu.memory_space<vmem>>, vector<1x196x32xbf16>
    %30 = vector.shape_cast %29 : vector<1x196x32xbf16> to vector<196x32xbf16>
    %cst_19 = arith.constant dense<0.000000e+00> : vector<2x32xf32>
    %31 = tpu.matmul %28, %30, %cst_19 {dimension_numbers = #tpu.dot_dimension_numbers<[1], [0], [0], [1], [0, 0, 1, 1], [], []>} : vector<2x196xbf16>, vector<196x32xbf16>, vector<2x32xf32> -> vector<2x32xf32>
    %32 = arith.addf %24, %31 : vector<2x32xf32>
    %33 = vector.extract_strided_slice %8 {offsets = [2, 0], sizes = [1, 196], strides = [1, 1]} : vector<8x196xf32> to vector<1x196xf32>
    %34 = vector.extract_strided_slice %15 {offsets = [2, 0], sizes = [1, 196], strides = [1, 1]} : vector<8x196xf32> to vector<1x196xf32>
    %35 = tpu.concatenate %33, %34 in 0 : vector<1x196xf32>, vector<1x196xf32> -> vector<2x196xf32>
    %36 = arith.truncf %35 : vector<2x196xf32> to vector<2x196xbf16>
    %c2 = arith.constant 2 : index
    %c0_20 = arith.constant 0 : index
    %c0_21 = arith.constant 0 : index
    %37 = vector.load %arg3[%c2, %c0_20, %c0_21] : memref<8x196x32xbf16, #tpu.memory_space<vmem>>, vector<1x196x32xbf16>
    %38 = vector.shape_cast %37 : vector<1x196x32xbf16> to vector<196x32xbf16>
    %cst_22 = arith.constant dense<0.000000e+00> : vector<2x32xf32>
    %39 = tpu.matmul %36, %38, %cst_22 {dimension_numbers = #tpu.dot_dimension_numbers<[1], [0], [0], [1], [0, 0, 1, 1], [], []>} : vector<2x196xbf16>, vector<196x32xbf16>, vector<2x32xf32> -> vector<2x32xf32>
    %40 = arith.addf %32, %39 : vector<2x32xf32>
    %41 = vector.extract_strided_slice %8 {offsets = [3, 0], sizes = [1, 196], strides = [1, 1]} : vector<8x196xf32> to vector<1x196xf32>
    %42 = vector.extract_strided_slice %15 {offsets = [3, 0], sizes = [1, 196], strides = [1, 1]} : vector<8x196xf32> to vector<1x196xf32>
    %43 = tpu.concatenate %41, %42 in 0 : vector<1x196xf32>, vector<1x196xf32> -> vector<2x196xf32>
    %44 = arith.truncf %43 : vector<2x196xf32> to vector<2x196xbf16>
    %c3 = arith.constant 3 : index
    %c0_23 = arith.constant 0 : index
    %c0_24 = arith.constant 0 : index
    %45 = vector.load %arg3[%c3, %c0_23, %c0_24] : memref<8x196x32xbf16, #tpu.memory_space<vmem>>, vector<1x196x32xbf16>
    %46 = vector.shape_cast %45 : vector<1x196x32xbf16> to vector<196x32xbf16>
    %cst_25 = arith.constant dense<0.000000e+00> : vector<2x32xf32>
    %47 = tpu.matmul %44, %46, %cst_25 {dimension_numbers = #tpu.dot_dimension_numbers<[1], [0], [0], [1], [0, 0, 1, 1], [], []>} : vector<2x196xbf16>, vector<196x32xbf16>, vector<2x32xf32> -> vector<2x32xf32>
    %48 = arith.addf %40, %47 : vector<2x32xf32>
    %49 = vector.extract_strided_slice %8 {offsets = [4, 0], sizes = [1, 196], strides = [1, 1]} : vector<8x196xf32> to vector<1x196xf32>
    %50 = vector.extract_strided_slice %15 {offsets = [4, 0], sizes = [1, 196], strides = [1, 1]} : vector<8x196xf32> to vector<1x196xf32>
    %51 = tpu.concatenate %49, %50 in 0 : vector<1x196xf32>, vector<1x196xf32> -> vector<2x196xf32>
    %52 = arith.truncf %51 : vector<2x196xf32> to vector<2x196xbf16>
    %c4 = arith.constant 4 : index
    %c0_26 = arith.constant 0 : index
    %c0_27 = arith.constant 0 : index
    %53 = vector.load %arg3[%c4, %c0_26, %c0_27] : memref<8x196x32xbf16, #tpu.memory_space<vmem>>, vector<1x196x32xbf16>
    %54 = vector.shape_cast %53 : vector<1x196x32xbf16> to vector<196x32xbf16>
    %cst_28 = arith.constant dense<0.000000e+00> : vector<2x32xf32>
    %55 = tpu.matmul %52, %54, %cst_28 {dimension_numbers = #tpu.dot_dimension_numbers<[1], [0], [0], [1], [0, 0, 1, 1], [], []>} : vector<2x196xbf16>, vector<196x32xbf16>, vector<2x32xf32> -> vector<2x32xf32>
    %56 = arith.addf %48, %55 : vector<2x32xf32>
    %57 = vector.extract_strided_slice %8 {offsets = [5, 0], sizes = [1, 196], strides = [1, 1]} : vector<8x196xf32> to vector<1x196xf32>
    %58 = vector.extract_strided_slice %15 {offsets = [5, 0], sizes = [1, 196], strides = [1, 1]} : vector<8x196xf32> to vector<1x196xf32>
    %59 = tpu.concatenate %57, %58 in 0 : vector<1x196xf32>, vector<1x196xf32> -> vector<2x196xf32>
    %60 = arith.truncf %59 : vector<2x196xf32> to vector<2x196xbf16>
    %c5 = arith.constant 5 : index
    %c0_29 = arith.constant 0 : index
    %c0_30 = arith.constant 0 : index
    %61 = vector.load %arg3[%c5, %c0_29, %c0_30] : memref<8x196x32xbf16, #tpu.memory_space<vmem>>, vector<1x196x32xbf16>
    %62 = vector.shape_cast %61 : vector<1x196x32xbf16> to vector<196x32xbf16>
    %cst_31 = arith.constant dense<0.000000e+00> : vector<2x32xf32>
    %63 = tpu.matmul %60, %62, %cst_31 {dimension_numbers = #tpu.dot_dimension_numbers<[1], [0], [0], [1], [0, 0, 1, 1], [], []>} : vector<2x196xbf16>, vector<196x32xbf16>, vector<2x32xf32> -> vector<2x32xf32>
    %64 = arith.addf %56, %63 : vector<2x32xf32>
    %65 = vector.extract_strided_slice %8 {offsets = [6, 0], sizes = [1, 196], strides = [1, 1]} : vector<8x196xf32> to vector<1x196xf32>
    %66 = vector.extract_strided_slice %15 {offsets = [6, 0], sizes = [1, 196], strides = [1, 1]} : vector<8x196xf32> to vector<1x196xf32>
    %67 = tpu.concatenate %65, %66 in 0 : vector<1x196xf32>, vector<1x196xf32> -> vector<2x196xf32>
    %68 = arith.truncf %67 : vector<2x196xf32> to vector<2x196xbf16>
    %c6 = arith.constant 6 : index
    %c0_32 = arith.constant 0 : index
    %c0_33 = arith.constant 0 : index
    %69 = vector.load %arg3[%c6, %c0_32, %c0_33] : memref<8x196x32xbf16, #tpu.memory_space<vmem>>, vector<1x196x32xbf16>
    %70 = vector.shape_cast %69 : vector<1x196x32xbf16> to vector<196x32xbf16>
    %cst_34 = arith.constant dense<0.000000e+00> : vector<2x32xf32>
    %71 = tpu.matmul %68, %70, %cst_34 {dimension_numbers = #tpu.dot_dimension_numbers<[1], [0], [0], [1], [0, 0, 1, 1], [], []>} : vector<2x196xbf16>, vector<196x32xbf16>, vector<2x32xf32> -> vector<2x32xf32>
    %72 = arith.addf %64, %71 : vector<2x32xf32>
    %73 = vector.extract_strided_slice %8 {offsets = [7, 0], sizes = [1, 196], strides = [1, 1]} : vector<8x196xf32> to vector<1x196xf32>
    %74 = vector.extract_strided_slice %15 {offsets = [7, 0], sizes = [1, 196], strides = [1, 1]} : vector<8x196xf32> to vector<1x196xf32>
    %75 = tpu.concatenate %73, %74 in 0 : vector<1x196xf32>, vector<1x196xf32> -> vector<2x196xf32>
    %76 = arith.truncf %75 : vector<2x196xf32> to vector<2x196xbf16>
    %c7 = arith.constant 7 : index
    %c0_35 = arith.constant 0 : index
    %c0_36 = arith.constant 0 : index
    %77 = vector.load %arg3[%c7, %c0_35, %c0_36] : memref<8x196x32xbf16, #tpu.memory_space<vmem>>, vector<1x196x32xbf16>
    %78 = vector.shape_cast %77 : vector<1x196x32xbf16> to vector<196x32xbf16>
    %cst_37 = arith.constant dense<0.000000e+00> : vector<2x32xf32>
    %79 = tpu.matmul %76, %78, %cst_37 {dimension_numbers = #tpu.dot_dimension_numbers<[1], [0], [0], [1], [0, 0, 1, 1], [], []>} : vector<2x196xbf16>, vector<196x32xbf16>, vector<2x32xf32> -> vector<2x32xf32>
    %80 = arith.addf %72, %79 : vector<2x32xf32>
    %c0_38 = arith.constant 0 : index
    %c0_39 = arith.constant 0 : index
    %81 = vector.load %arg4[%c0_38, %c0_39] : memref<1x32xf32, #tpu.memory_space<vmem>>, vector<1x32xf32>
    %82 = vector.broadcast %81 : vector<1x32xf32> to vector<2x32xf32>
    %83 = arith.addf %80, %82 : vector<2x32xf32>
    %c0_40 = arith.constant 0 : index
    %c0_41 = arith.constant 0 : index
    %84 = vector.load %arg5[%c0_40, %c0_41] : memref<32x32xf32, #tpu.memory_space<vmem>>, vector<32x32xf32>
    %cst_42 = arith.constant dense<0.000000e+00> : vector<2x32xf32>
    %85 = tpu.matmul %83, %84, %cst_42 {dimension_numbers = #tpu.dot_dimension_numbers<[1], [0], [0], [1], [0, 0, 1, 1], [], []>} : vector<2x32xf32>, vector<32x32xf32>, vector<2x32xf32> -> vector<2x32xf32>
    %c0_43 = arith.constant 0 : index
    %c0_44 = arith.constant 0 : index
    %86 = vector.load %arg6[%c0_43, %c0_44] : memref<1x32xf32, #tpu.memory_space<vmem>>, vector<1x32xf32>
    %87 = vector.broadcast %86 : vector<1x32xf32> to vector<2x32xf32>
    %88 = arith.addf %85, %87 : vector<2x32xf32>
    %cst_45 = arith.constant 0.000000e+00 : f32
    %89 = vector.broadcast %cst_45 : f32 to vector<2x32xf32>
    %90 = arith.maximumf %88, %89 : vector<2x32xf32>
    %c0_46 = arith.constant 0 : index
    %c0_47 = arith.constant 0 : index
    %91 = vector.load %arg7[%c0_46, %c0_47] : memref<32x32xf32, #tpu.memory_space<vmem>>, vector<32x32xf32>
    %cst_48 = arith.constant dense<0.000000e+00> : vector<2x32xf32>
    %92 = tpu.matmul %90, %91, %cst_48 {dimension_numbers = #tpu.dot_dimension_numbers<[1], [0], [0], [1], [0, 0, 1, 1], [], []>} : vector<2x32xf32>, vector<32x32xf32>, vector<2x32xf32> -> vector<2x32xf32>
    %c0_49 = arith.constant 0 : index
    %c0_50 = arith.constant 0 : index
    %93 = vector.load %arg8[%c0_49, %c0_50] : memref<1x32xf32, #tpu.memory_space<vmem>>, vector<1x32xf32>
    %94 = vector.broadcast %93 : vector<1x32xf32> to vector<2x32xf32>
    %95 = arith.addf %92, %94 : vector<2x32xf32>
    %c0_51 = arith.constant 0 : index
    %c0_52 = arith.constant 0 : index
    %96 = vector.load %arg10[%c0_51, %c0_52] : memref<2x32xf32, #tpu.memory_space<vmem>>, vector<2x32xf32>
    tpu.vector_store %arg10[%c0_51, %c0_52], %95 {strides = array<i32>} : memref<2x32xf32, #tpu.memory_space<vmem>>, vector<2x32xf32>,
    %c0_53 = arith.constant 0 : index
    %c0_54 = arith.constant 0 : index
    %97 = vector.load %arg9[%c0_53, %c0_54] : memref<32x8xf32, #tpu.memory_space<vmem>>, vector<32x8xf32>
    %cst_55 = arith.constant dense<0.000000e+00> : vector<2x8xf32>
    %98 = tpu.matmul %95, %97, %cst_55 {dimension_numbers = #tpu.dot_dimension_numbers<[1], [0], [0], [1], [0, 0, 1, 1], [], []>} : vector<2x32xf32>, vector<32x8xf32>, vector<2x8xf32> -> vector<2x8xf32>
    %99 = vector.extract_strided_slice %98 {offsets = [0, 0], sizes = [2, 4], strides = [1, 1]} : vector<2x8xf32> to vector<2x4xf32>
    %100 = vector.extract_strided_slice %98 {offsets = [0, 4], sizes = [2, 4], strides = [1, 1]} : vector<2x8xf32> to vector<2x4xf32>
    %101 = arith.maximumf %99, %100 : vector<2x4xf32>
    %c0_56 = arith.constant 0 : index
    %c0_57 = arith.constant 0 : index
    %102 = vector.load %arg11[%c0_56, %c0_57] : memref<2x4xf32, #tpu.memory_space<vmem>>, vector<2x4xf32>
    tpu.vector_store %arg11[%c0_56, %c0_57], %101 {strides = array<i32>} : memref<2x4xf32, #tpu.memory_space<vmem>>, vector<2x4xf32>,
    return
  }
}

</mosaic_0001>

<llo_original>
// kernel: tile.8
$region0: #{tile.8}
  #allocation0 [shape = 's32[1]{0}', space=sflag, size = 0x4, scoped, tag = 'scoped memory for tile.8']
  %s0 = inlined_call_operand.vmem [shape: f32[4], index: 0, kind: input, shape index: {}]
  %s1 = inlined_call_operand.vmem [shape: f32[8,4], index: 1, kind: output, shape index: {}]
  // Predicated region
  $region2: #{tile.8} parent=0 // pred_check
    _
  $region3: #{tile.8} parent=0 // pred_check_branch
    %3 = sbr.rel (0) target = $region5
  $region4: #{tile.8} parent=0 // pred_region
    _
  $region5: #{tile.8} parent=0 // pred_fallthru
    _
  %v4 = vld [vmem:[%s0] ss:$0 sm:$0xff]
  %5 = vst [vmem:[%s1] sm:$0xff] %v4

// kernel: mul.5
$region0: #{mul.5}
  %s0 = inlined_call_operand.vmem [shape: f32[8,4], index: 0, kind: input, shape index: {}]
  %s1 = inlined_call_operand.vmem [shape: f32[32], index: 1, kind: output, shape index: {}]
  $region1: #{mul.5} parent=0
    #allocation0 [shape = 'u8[4096]{0}', space=vmem, size = 0x1000, scoped, tag = 'scoped mem for output reshape']
    %v2 = vld [vmem:[%s0] sm:$0x1]
    %vm3 = vcmask 31744
    %4 = vst.msk [vmem:[#allocation0] sm:$0x1] %vm3, %v2
    %s5 = scalar_lea.vmem %s0, 7
    %v6 = vld [vmem:[%s5] sm:$0x1]
    %7 = vrot.lane.b32.xlu0 %v6, 28
    %v8 = vpop.permute.xlu0 %7
    %vm9 = vcmask 261344
    %10 = vst.msk [vmem:[#allocation0] sm:$0x1] %vm9, %v8
    %s11 = scalar_lea.vmem %s0, 6
    %v12 = vld [vmem:[%s11] sm:$0x1]
    %13 = vrot.lane.b32.xlu0 %v12, 24
    %v14 = vpop.permute.xlu0 %13
    %vm15 = vcmask 228544
    %16 = vst.msk [vmem:[#allocation0] sm:$0x1] %vm15, %v14
    %s17 = scalar_lea.vmem %s0, 5
    %v18 = vld [vmem:[%s17] sm:$0x1]
    %19 = vrot.lane.b32.xlu0 %v18, 20
    %v20 = vpop.permute.xlu0 %19
    %vm21 = vcmask 195744
    %22 = vst.msk [vmem:[#allocation0] sm:$0x1] %vm21, %v20
    %s23 = scalar_lea.vmem %s0, 4
    %v24 = vld [vmem:[%s23] sm:$0x1]
    %25 = vrot.lane.b32.xlu0 %v24, 16
    %v26 = vpop.permute.xlu0 %25
    %vm27 = vcmask 162944
    %28 = vst.msk [vmem:[#allocation0] sm:$0x1] %vm27, %v26
    %s29 = scalar_lea.vmem %s0, 3
    %v30 = vld [vmem:[%s29] sm:$0x1]
    %31 = vrot.lane.b32.xlu0 %v30, 12
    %v32 = vpop.permute.xlu0 %31
    %vm33 = vcmask 130144
    %34 = vst.msk [vmem:[#allocation0] sm:$0x1] %vm33, %v32
    %s35 = scalar_lea.vmem %s0, 2
    %v36 = vld [vmem:[%s35] sm:$0x1]
    %37 = vrot.lane.b32.xlu0 %v36, 8
    %v38 = vpop.permute.xlu0 %37
    %vm39 = vcmask 97344
    %40 = vst.msk [vmem:[#allocation0] sm:$0x1] %vm39, %v38
    %s41 = scalar_lea.vmem %s0, 1
    %v42 = vld [vmem:[%s41] sm:$0x1]
    %43 = vrot.lane.b32.xlu0 %v42, 4
    %v44 = vpop.permute.xlu0 %43
    %vm45 = vcmask 64544
    %46 = vst.msk [vmem:[#allocation0] sm:$0x1] %vm45, %v44
    %s48 = sshllo.u32 0, 1
    %v50 = vld [vmem:[#allocation0] sm:%s48]
    %s51 = sshllo.u32 0, 1
    %52 = vst [vmem:[%s1] sm:%s51] %v50

// kernel: dqn_forward.1
$region0: #{dqn_forward.1}
  #allocation0 [shape = 'u32[]', space=smem, size = 0x4, offset = 0x4, fixed_abs, tag = 'smem constant byte address 0x4 - core index']
  #allocation1 [shape = 'u32[144,128]{1,0:T(1,128)}', space=vmem, size = 0x12000, scoped, tag = 'internal scratch']
  %s0 = inlined_call_operand.vmem [shape: f32[2,36,196], index: 0, kind: input, shape index: {}]
  %s1 = inlined_call_operand.vmem [shape: f32[8,36], index: 1, kind: input, shape index: {}]
  %s2 = inlined_call_operand.vmem [shape: f32[8,1], index: 2, kind: input, shape index: {}]
  %s3 = inlined_call_operand.vmem [shape: bf16[8,196,32], index: 3, kind: input, shape index: {}]
  %s4 = inlined_call_operand.vmem [shape: f32[1,32], index: 4, kind: input, shape index: {}]
  %s5 = inlined_call_operand.vmem [shape: f32[32,32], index: 5, kind: input, shape index: {}]
  %s6 = inlined_call_operand.vmem [shape: f32[1,32], index: 6, kind: input, shape index: {}]
  %s7 = inlined_call_operand.vmem [shape: f32[32,32], index: 7, kind: input, shape index: {}]
  %s8 = inlined_call_operand.vmem [shape: f32[1,32], index: 8, kind: input, shape index: {}]
  %s9 = inlined_call_operand.vmem [shape: f32[32,8], index: 9, kind: input, shape index: {}]
  %s10 = inlined_call_operand.vmem [shape: f32[2,32], index: 10, kind: output, shape index: {0}]
  %s11 = inlined_call_operand.hbm [shape: f32[2,4], index: 11, kind: output, shape index: {1}]
  %12 = xla_tuple %s10, %s11
  %s13 = sld [smem:[#allocation0]]
  $region58: #{dqn_forward.1} parent=0
    _
  %s15 = ssub.s32 1, %s13
  %s16 = scalar_select 0, %s15, %s13
  $region1: #{dqn_forward.1} parent=0
    #allocation2 [shape = 'u8[1024]{0}', space=vmem, size = 0x400, scoped, tag = 'output window, operand 1, single buffered']
    #allocation3 [shape = 's32[1]{0}', space=sflag, size = 0x4, scoped, tag = 'scoped memory for dqn_forward.1']
    %17 = vsyncpa [#allocation3], 0
    // Predicated region
    $region2: #{dqn_forward.1} parent=1 // pred_check
      _
    $region3: #{dqn_forward.1} parent=1 // pred_check_branch
      %19 = sbr.rel (0) target = $region5
    $region4: #{dqn_forward.1} parent=1 // pred_region
      _
    $region5: #{dqn_forward.1} parent=1 // pred_fallthru
      _
    // Predicated region
    $region6: #{dqn_forward.1} parent=1 // pred_check
      _
    $region7: #{dqn_forward.1} parent=1 // pred_check_branch
      %21 = sbr.rel (0) target = $region9
    $region8: #{dqn_forward.1} parent=1 // pred_region
      _
    $region9: #{dqn_forward.1} parent=1 // pred_fallthru
      _
    // Predicated region
    $region10: #{dqn_forward.1} parent=1 // pred_check
      _
    $region11: #{dqn_forward.1} parent=1 // pred_check_branch
      %23 = sbr.rel (0) target = $region13
    $region12: #{dqn_forward.1} parent=1 // pred_region
      _
    $region13: #{dqn_forward.1} parent=1 // pred_fallthru
      _
    // Predicated region
    $region14: #{dqn_forward.1} parent=1 // pred_check
      _
    $region15: #{dqn_forward.1} parent=1 // pred_check_branch
      %25 = sbr.rel (0) target = $region17
    $region16: #{dqn_forward.1} parent=1 // pred_region
      _
    $region17: #{dqn_forward.1} parent=1 // pred_fallthru
      _
    // Predicated region
    $region18: #{dqn_forward.1} parent=1 // pred_check
      _
    $region19: #{dqn_forward.1} parent=1 // pred_check_branch
      %27 = sbr.rel (0) target = $region21
    $region20: #{dqn_forward.1} parent=1 // pred_region
      _
    $region21: #{dqn_forward.1} parent=1 // pred_fallthru
      _
    // Predicated region
    $region22: #{dqn_forward.1} parent=1 // pred_check
      _
    $region23: #{dqn_forward.1} parent=1 // pred_check_branch
      %29 = sbr.rel (0) target = $region25
    $region24: #{dqn_forward.1} parent=1 // pred_region
      _
    $region25: #{dqn_forward.1} parent=1 // pred_fallthru
      _
    // Predicated region
    $region26: #{dqn_forward.1} parent=1 // pred_check
      _
    $region27: #{dqn_forward.1} parent=1 // pred_check_branch
      %31 = sbr.rel (0) target = $region29
    $region28: #{dqn_forward.1} parent=1 // pred_region
      _
    $region29: #{dqn_forward.1} parent=1 // pred_fallthru
      _
    // Predicated region
    $region30: #{dqn_forward.1} parent=1 // pred_check
      _
    $region31: #{dqn_forward.1} parent=1 // pred_check_branch
      %33 = sbr.rel (0) target = $region33
    $region32: #{dqn_forward.1} parent=1 // pred_region
      _
    $region33: #{dqn_forward.1} parent=1 // pred_fallthru
      _
    // Predicated region
    $region34: #{dqn_forward.1} parent=1 // pred_check
      _
    $region35: #{dqn_forward.1} parent=1 // pred_check_branch
      %35 = sbr.rel (0) target = $region37
    $region36: #{dqn_forward.1} parent=1 // pred_region
      _
    $region37: #{dqn_forward.1} parent=1 // pred_fallthru
      _
    // Predicated region
    $region38: #{dqn_forward.1} parent=1 // pred_check
      _
    $region39: #{dqn_forward.1} parent=1 // pred_check_branch
      %37 = sbr.rel (0) target = $region41
    $region40: #{dqn_forward.1} parent=1 // pred_region
      _
    $region41: #{dqn_forward.1} parent=1 // pred_fallthru
      _
    %v39 = vld [vmem:[%s1] sm:$0xff]
    %v40 = vld [vmem:[%s2] sm:$0xff]
    %v41 = vld [vmem:[%s0] sm:$0xff]
    %v42 = vld [vmem:[%s0 + $0x8] sm:$0xff]
    %v43 = vld [vmem:[%s0 + $0x10] sm:$0xff]
    %v44 = vld [vmem:[%s0 + $0x18] sm:$0xff]
    %v45 = vld [vmem:[%s0 + $0x20] sm:$0xff]
    %v46 = vld [vmem:[%s0 + $0x28] sm:$0xff]
    %v47 = vld [vmem:[%s0 + $0x30] sm:$0xff]
    %v48 = vld [vmem:[%s0 + $0x38] sm:$0xff]
    %v49 = vld [vmem:[%s0 + $0x40] sm:$0xf]
    %v50 = vld [vmem:[%s0 + $0x48] sm:$0xf]
    %52 = vset.pattern.permute.xlu0 0
    %53 = vperm.xlu0 %52, %v40
    %v54 = vpop.permute.xlu0 %53
    %vm56 = vcmask 293888
    %v58 = vsel %vm56, %v39, 0
    %vm60 = vcmask 1043456
    %v62 = vsel %vm60, %v49, 0
    %v65 = vsel %vm60, %v50, 0
    %67 = vmatprep.subr.mxu0 %v42
    %68 = vmatpush1.msra.mxu0 %v41
    %69 = vmatprep.subr.mxu0 %v44
    %70 = vmatpush1.msra.mxu0 %v43
    %71 = vmatprep.subr.mxu0 %v46
    %72 = vmatpush1.msra.mxu0 %v45
    %73 = vmatprep.subr.mxu0 %v48
    %74 = vmatpush1.msra.mxu0 %v47
    %75 = vmatprep.subr.mxu0 %v65
    %76 = vmatpush1.msra.mxu0 %v62
    %77 = vmatprep.subr.mxu0 0.0
    %78 = vmatpush1.msra.mxu0 0.0
    %79 = vmatprep.subr.mxu0 0.0
    %80 = vmatpush1.msra.mxu0 0.0
    %81 = vmatprep.subr.mxu0 0.0
    %82 = vmatpush1.msra.mxu0 0.0
    %83 = vmatprep.subr.mxu0 0.0
    %84 = vmatpush1.msra.mxu0 0.0
    %85 = vmatprep.subr.mxu0 0.0
    %86 = vmatpush1.msra.mxu0 0.0
    %87 = vmatprep.subr.mxu0 0.0
    %88 = vmatpush1.msra.mxu0 0.0
    %89 = vmatprep.subr.mxu0 0.0
    %90 = vmatpush1.msra.mxu0 0.0
    %91 = vmatprep.subr.mxu0 0.0
    %92 = vmatpush1.msra.mxu0 0.0
    %93 = vmatprep.subr.mxu0 0.0
    %94 = vmatpush1.msra.mxu0 0.0
    %95 = vmatprep.subr.mxu0 0.0
    %96 = vmatpush1.msra.mxu0 0.0
    %97 = vmatprep.subr.mxu0 0.0
    %98 = vmatpush1.msra.mxu0 0.0
    %99 = vmatprep.subr.mxu0 0.0
    %100 = vmatpush1.msra.mxu0 0.0
    %101 = vmatprep.subr.mxu0 0.0
    %102 = vmatpush1.msra.mxu0 0.0
    %103 = vmatprep.subr.mxu0 0.0
    %104 = vmatpush1.msra.mxu0 0.0
    %105 = vmatprep.subr.mxu0 0.0
    %106 = vmatpush1.msra.mxu0 0.0
    %107 = vmatprep.subr.mxu0 0.0
    %108 = vmatpush1.msra.mxu0 0.0
    %109 = vmatprep.subr.mxu0 0.0
    %110 = vmatpush1.msra.mxu0 0.0
    %111 = vmatprep.subr.mxu0 0.0
    %112 = vmatpush1.msra.mxu0 0.0
    %113 = vmatprep.subr.mxu0 0.0
    %114 = vmatpush1.msra.mxu0 0.0
    %115 = vmatprep.subr.mxu0 0.0
    %116 = vmatpush1.msra.mxu0 0.0
    %117 = vmatprep.subr.mxu0 0.0
    %118 = vmatpush1.msra.mxu0 0.0
    %119 = vmatprep.subr.mxu0 0.0
    %120 = vmatpush1.msra.mxu0 0.0
    %121 = vmatprep.subr.mxu0 0.0
    %122 = vmatpush1.msra.mxu0 0.0
    %123 = vmatprep.subr.mxu0 0.0
    %124 = vmatpush1.msra.mxu0 0.0
    %125 = vmatprep.subr.mxu0 0.0
    %126 = vmatpush1.msra.mxu0 0.0
    %127 = vmatprep.subr.mxu0 0.0
    %128 = vmatpush1.msra.mxu0 0.0
    %129 = vmatprep.subr.mxu0 0.0
    %130 = vmatpush1.msra.mxu0 0.0
    %131 = vmatprep.mubr.f32.mxu0 0.0
    %132 = vmatmul.mubr.f32.gmra.mrb[0].mxu0 %v58
    %v133 = vpop.f32.mrb[0].mxu0
    %v134 = vadd.f32 %v54, %v133
    %v135 = vpop.f32.mrb[0].mxu0
    %v136 = vadd.f32 %v54, %v135
    %137 = vdwg.mxu0
    %v138 = vmax.f32 %v134, 0.0
    %v139 = vmax.f32 %v136, 0.0
    %s140 = scalar_lea.vmem %s0, 80
    %v141 = vld [vmem:[%s140] sm:$0xff]
    %v142 = vld [vmem:[%s140 + $0x8] sm:$0xff]
    %v143 = vld [vmem:[%s140 + $0x10] sm:$0xff]
    %v144 = vld [vmem:[%s140 + $0x18] sm:$0xff]
    %v145 = vld [vmem:[%s140 + $0x20] sm:$0xff]
    %v146 = vld [vmem:[%s140 + $0x28] sm:$0xff]
    %v147 = vld [vmem:[%s140 + $0x30] sm:$0xff]
    %v148 = vld [vmem:[%s140 + $0x38] sm:$0xff]
    %v149 = vld [vmem:[%s140 + $0x40] sm:$0xf]
    %v150 = vld [vmem:[%s140 + $0x48] sm:$0xf]
    %v152 = vsel %vm60, %v149, 0
    %v155 = vsel %vm60, %v150, 0
    %157 = vmatprep.subr.mxu0 %v142
    %158 = vmatpush1.msra.mxu0 %v141
    %159 = vmatprep.subr.mxu0 %v144
    %160 = vmatpush1.msra.mxu0 %v143
    %161 = vmatprep.subr.mxu0 %v146
    %162 = vmatpush1.msra.mxu0 %v145
    %163 = vmatprep.subr.mxu0 %v148
    %164 = vmatpush1.msra.mxu0 %v147
    %165 = vmatprep.subr.mxu0 %v155
    %166 = vmatpush1.msra.mxu0 %v152
    %167 = vmatprep.subr.mxu0 0.0
    %168 = vmatpush1.msra.mxu0 0.0
    %169 = vmatprep.subr.mxu0 0.0
    %170 = vmatpush1.msra.mxu0 0.0
    %171 = vmatprep.subr.mxu0 0.0
    %172 = vmatpush1.msra.mxu0 0.0
    %173 = vmatprep.subr.mxu0 0.0
    %174 = vmatpush1.msra.mxu0 0.0
    %175 = vmatprep.subr.mxu0 0.0
    %176 = vmatpush1.msra.mxu0 0.0
    %177 = vmatprep.subr.mxu0 0.0
    %178 = vmatpush1.msra.mxu0 0.0
    %179 = vmatprep.subr.mxu0 0.0
    %180 = vmatpush1.msra.mxu0 0.0
    %181 = vmatprep.subr.mxu0 0.0
    %182 = vmatpush1.msra.mxu0 0.0
    %183 = vmatprep.subr.mxu0 0.0
    %184 = vmatpush1.msra.mxu0 0.0
    %185 = vmatprep.subr.mxu0 0.0
    %186 = vmatpush1.msra.mxu0 0.0
    %187 = vmatprep.subr.mxu0 0.0
    %188 = vmatpush1.msra.mxu0 0.0
    %189 = vmatprep.subr.mxu0 0.0
    %190 = vmatpush1.msra.mxu0 0.0
    %191 = vmatprep.subr.mxu0 0.0
    %192 = vmatpush1.msra.mxu0 0.0
    %193 = vmatprep.subr.mxu0 0.0
    %194 = vmatpush1.msra.mxu0 0.0
    %195 = vmatprep.subr.mxu0 0.0
    %196 = vmatpush1.msra.mxu0 0.0
    %197 = vmatprep.subr.mxu0 0.0
    %198 = vmatpush1.msra.mxu0 0.0
    %199 = vmatprep.subr.mxu0 0.0
    %200 = vmatpush1.msra.mxu0 0.0
    %201 = vmatprep.subr.mxu0 0.0
    %202 = vmatpush1.msra.mxu0 0.0
    %203 = vmatprep.subr.mxu0 0.0
    %204 = vmatpush1.msra.mxu0 0.0
    %205 = vmatprep.subr.mxu0 0.0
    %206 = vmatpush1.msra.mxu0 0.0
    %207 = vmatprep.subr.mxu0 0.0
    %208 = vmatpush1.msra.mxu0 0.0
    %209 = vmatprep.subr.mxu0 0.0
    %210 = vmatpush1.msra.mxu0 0.0
    %211 = vmatprep.subr.mxu0 0.0
    %212 = vmatpush1.msra.mxu0 0.0
    %213 = vmatprep.subr.mxu0 0.0
    %214 = vmatpush1.msra.mxu0 0.0
    %215 = vmatprep.subr.mxu0 0.0
    %216 = vmatpush1.msra.mxu0 0.0
    %217 = vmatprep.subr.mxu0 0.0
    %218 = vmatpush1.msra.mxu0 0.0
    %219 = vmatprep.subr.mxu0 0.0
    %220 = vmatpush1.msra.mxu0 0.0
    %221 = vmatprep.mubr.f32.mxu0 0.0
    %222 = vmatmul.mubr.f32.gmra.mrb[0].mxu0 %v58
    %v223 = vpop.f32.mrb[0].mxu0
    %v224 = vadd.f32 %v54, %v223
    %v225 = vpop.f32.mrb[0].mxu0
    %v226 = vadd.f32 %v54, %v225
    %227 = vdwg.mxu0
    %v228 = vmax.f32 %v224, 0.0
    %v229 = vmax.f32 %v226, 0.0
    %v232 = vrot.slane %v228, 7
    %v233 = vrot.slane %v229, 7
    %vm236 = vcmask 1040384
    %v237 = vsel %vm236, %v138, %v232
    %v238 = vsel %vm236, %v139, %v233
    %v239 = vpack.c.bf16 %v237, %v237
    %v240 = vpack.c.bf16 %v238, %v238
    %v241 = vld [vmem:[%s3] sm:$0xf]
    %v242 = vld [vmem:[%s3 + $0x4] sm:$0xf]
    %v243 = vld [vmem:[%s3 + $0x8] sm:$0xf]
    %v244 = vld [vmem:[%s3 + $0xc] sm:$0xf]
    %v245 = vld [vmem:[%s3 + $0x10] sm:$0xf]
    %v246 = vld [vmem:[%s3 + $0x14] sm:$0xf]
    %v247 = vld [vmem:[%s3 + $0x18] sm:$0xf]
    %v248 = vld [vmem:[%s3 + $0x1c] sm:$0xf]
    %v249 = vld [vmem:[%s3 + $0x20] sm:$0xf]
    %v250 = vld [vmem:[%s3 + $0x24] sm:$0xf]
    %v251 = vld [vmem:[%s3 + $0x28] sm:$0xf]
    %v252 = vld [vmem:[%s3 + $0x2c] sm:$0xf]
    %v253 = vld [vmem:[%s3 + $0x30] sm:$0xf]
    %v254 = vld [vmem:[%s3 + $0x34] sm:$0xf]
    %v255 = vld [vmem:[%s3 + $0x38] sm:$0xf]
    %v256 = vld [vmem:[%s3 + $0x3c] sm:$0xf]
    %v257 = vld [vmem:[%s3 + $0x40] sm:$0xf]
    %v258 = vld [vmem:[%s3 + $0x44] sm:$0xf]
    %v259 = vld [vmem:[%s3 + $0x48] sm:$0xf]
    %v260 = vld [vmem:[%s3 + $0x4c] sm:$0xf]
    %v261 = vld [vmem:[%s3 + $0x50] sm:$0xf]
    %v262 = vld [vmem:[%s3 + $0x54] sm:$0xf]
    %v263 = vld [vmem:[%s3 + $0x58] sm:$0xf]
    %v264 = vld [vmem:[%s3 + $0x5c] sm:$0xf]
    %v265 = vld [vmem:[%s3 + $0x60] sm:$0x3]
    %v268 = vrot.slane %v138, 1
    %v269 = vrot.slane %v139, 1
    %v272 = vsel %vm236, %v268, %v228
    %v273 = vsel %vm236, %v269, %v229
    %v274 = vpack.c.bf16 %v272, %v272
    %v275 = vpack.c.bf16 %v273, %v273
    %s276 = scalar_lea.vmem %s3, 100
    %v277 = vld [vmem:[%s276] sm:$0xf]
    %v278 = vld [vmem:[%s276 + $0x4] sm:$0xf]
    %v279 = vld [vmem:[%s276 + $0x8] sm:$0xf]
    %v280 = vld [vmem:[%s276 + $0xc] sm:$0xf]
    %v281 = vld [vmem:[%s276 + $0x10] sm:$0xf]
    %v282 = vld [vmem:[%s276 + $0x14] sm:$0xf]
    %v283 = vld [vmem:[%s276 + $0x18] sm:$0xf]
    %v284 = vld [vmem:[%s276 + $0x1c] sm:$0xf]
    %v285 = vld [vmem:[%s276 + $0x20] sm:$0xf]
    %v286 = vld [vmem:[%s276 + $0x24] sm:$0xf]
    %v287 = vld [vmem:[%s276 + $0x28] sm:$0xf]
    %v288 = vld [vmem:[%s276 + $0x2c] sm:$0xf]
    %v289 = vld [vmem:[%s276 + $0x30] sm:$0xf]
    %v290 = vld [vmem:[%s276 + $0x34] sm:$0xf]
    %v291 = vld [vmem:[%s276 + $0x38] sm:$0xf]
    %v292 = vld [vmem:[%s276 + $0x3c] sm:$0xf]
    %v293 = vld [vmem:[%s276 + $0x40] sm:$0xf]
    %v294 = vld [vmem:[%s276 + $0x44] sm:$0xf]
    %v295 = vld [vmem:[%s276 + $0x48] sm:$0xf]
    %v296 = vld [vmem:[%s276 + $0x4c] sm:$0xf]
    %v297 = vld [vmem:[%s276 + $0x50] sm:$0xf]
    %v298 = vld [vmem:[%s276 + $0x54] sm:$0xf]
    %v299 = vld [vmem:[%s276 + $0x58] sm:$0xf]
    %v300 = vld [vmem:[%s276 + $0x5c] sm:$0xf]
    %v301 = vld [vmem:[%s276 + $0x60] sm:$0x3]
    %v327 = vunpack.c.l.b16 %v277
    %v328 = vunpack.c.l.b16 %v278
    %v329 = vunpack.c.l.b16 %v279
    %v330 = vunpack.c.l.b16 %v280
    %v331 = vunpack.c.l.b16 %v281
    %v332 = vunpack.c.l.b16 %v282
    %v333 = vunpack.c.l.b16 %v283
    %v334 = vunpack.c.l.b16 %v284
    %v335 = vunpack.c.l.b16 %v285
    %v336 = vunpack.c.l.b16 %v286
    %v337 = vunpack.c.l.b16 %v287
    %v338 = vunpack.c.l.b16 %v288
    %v339 = vunpack.c.l.b16 %v289
    %v340 = vunpack.c.l.b16 %v290
    %v341 = vunpack.c.l.b16 %v291
    %v342 = vunpack.c.l.b16 %v292
    %v343 = vunpack.c.l.b16 %v293
    %v344 = vunpack.c.l.b16 %v294
    %v345 = vunpack.c.l.b16 %v295
    %v346 = vunpack.c.l.b16 %v296
    %v347 = vunpack.c.l.b16 %v297
    %v348 = vunpack.c.l.b16 %v298
    %v349 = vunpack.c.l.b16 %v299
    %v350 = vunpack.c.l.b16 %v300
    %v351 = vunpack.c.l.b16 %v301
    %v352 = vpack.c.b16 %v328, %v327
    %v353 = vpack.c.b16 %v330, %v329
    %v354 = vpack.c.b16 %v332, %v331
    %v355 = vpack.c.b16 %v334, %v333
    %v356 = vpack.c.b16 %v336, %v335
    %v357 = vpack.c.b16 %v338, %v337
    %v358 = vpack.c.b16 %v340, %v339
    %v359 = vpack.c.b16 %v342, %v341
    %v360 = vpack.c.b16 %v344, %v343
    %v361 = vpack.c.b16 %v346, %v345
    %v362 = vpack.c.b16 %v348, %v347
    %v363 = vpack.c.b16 %v350, %v349
    %v364 = vpack.c.b16 %v351, %v351
    %vm377 = vcmask 556032
    %v379 = vsel %vm377, %v275, 0
    %vm381 = vcmask 1041408
    %v383 = vsel %vm381, %v364, 0
    %385 = vmatprep.subr.bf16.mxu0 0
    %386 = vmatpush1.bf16.msra.mxu0 %v352
    %387 = vmatprep.subr.bf16.mxu0 0
    %388 = vmatpush1.bf16.msra.mxu0 %v353
    %389 = vmatprep.subr.bf16.mxu0 0
    %390 = vmatpush1.bf16.msra.mxu0 %v354
    %391 = vmatprep.subr.bf16.mxu0 0
    %392 = vmatpush1.bf16.msra.mxu0 %v355
    %393 = vmatprep.subr.bf16.mxu0 0
    %394 = vmatpush1.bf16.msra.mxu0 %v356
    %395 = vmatprep.subr.bf16.mxu0 0
    %396 = vmatpush1.bf16.msra.mxu0 %v357
    %397 = vmatprep.subr.bf16.mxu0 0
    %398 = vmatpush1.bf16.msra.mxu0 %v358
    %399 = vmatprep.subr.bf16.mxu0 0
    %400 = vmatpush1.bf16.msra.mxu0 %v359
    %401 = vmatprep.subr.bf16.mxu0 0
    %402 = vmatpush1.bf16.msra.mxu0 %v360
    %403 = vmatprep.subr.bf16.mxu0 0
    %404 = vmatpush1.bf16.msra.mxu0 %v361
    %405 = vmatprep.subr.bf16.mxu0 0
    %406 = vmatpush1.bf16.msra.mxu0 %v362
    %407 = vmatprep.subr.bf16.mxu0 0
    %408 = vmatpush1.bf16.msra.mxu0 %v363
    %409 = vmatprep.subr.bf16.mxu0 0
    %410 = vmatpush1.bf16.msra.mxu0 %v383
    %411 = vmatprep.subr.bf16.mxu0 0
    %412 = vmatpush1.bf16.msra.mxu0 0
    %413 = vmatprep.subr.bf16.mxu0 0
    %414 = vmatpush1.bf16.msra.mxu0 0
    %415 = vmatprep.subr.bf16.mxu0 0
    %416 = vmatpush1.bf16.msra.mxu0 0
    %417 = vmatprep.mubr.bf16.mxu0 %v379
    %418 = vmatmul.mubr.bf16.gmra.mrb[0].mxu0 %v274
    %v419 = vpop.f32.mrb[0].mxu0
    %v420 = vadd.f32 0.0, %v419
    %v421 = vpop.f32.mrb[0].mxu0
    %v422 = vpop.f32.mrb[0].mxu0
    %v423 = vpop.f32.mrb[0].mxu0
    %424 = vdwg.mxu0
    %v450 = vunpack.c.l.b16 %v241
    %v451 = vunpack.c.l.b16 %v242
    %v452 = vunpack.c.l.b16 %v243
    %v453 = vunpack.c.l.b16 %v244
    %v454 = vunpack.c.l.b16 %v245
    %v455 = vunpack.c.l.b16 %v246
    %v456 = vunpack.c.l.b16 %v247
    %v457 = vunpack.c.l.b16 %v248
    %v458 = vunpack.c.l.b16 %v249
    %v459 = vunpack.c.l.b16 %v250
    %v460 = vunpack.c.l.b16 %v251
    %v461 = vunpack.c.l.b16 %v252
    %v462 = vunpack.c.l.b16 %v253
    %v463 = vunpack.c.l.b16 %v254
    %v464 = vunpack.c.l.b16 %v255
    %v465 = vunpack.c.l.b16 %v256
    %v466 = vunpack.c.l.b16 %v257
    %v467 = vunpack.c.l.b16 %v258
    %v468 = vunpack.c.l.b16 %v259
    %v469 = vunpack.c.l.b16 %v260
    %v470 = vunpack.c.l.b16 %v261
    %v471 = vunpack.c.l.b16 %v262
    %v472 = vunpack.c.l.b16 %v263
    %v473 = vunpack.c.l.b16 %v264
    %v474 = vunpack.c.l.b16 %v265
    %v475 = vpack.c.b16 %v451, %v450
    %v476 = vpack.c.b16 %v453, %v452
    %v477 = vpack.c.b16 %v455, %v454
    %v478 = vpack.c.b16 %v457, %v456
    %v479 = vpack.c.b16 %v459, %v458
    %v480 = vpack.c.b16 %v461, %v460
    %v481 = vpack.c.b16 %v463, %v462
    %v482 = vpack.c.b16 %v465, %v464
    %v483 = vpack.c.b16 %v467, %v466
    %v484 = vpack.c.b16 %v469, %v468
    %v485 = vpack.c.b16 %v471, %v470
    %v486 = vpack.c.b16 %v473, %v472
    %v487 = vpack.c.b16 %v474, %v474
    %v501 = vsel %vm377, %v240, 0
    %v504 = vsel %vm381, %v487, 0
    %506 = vmatprep.subr.bf16.mxu0 0
    %507 = vmatpush1.bf16.msra.mxu0 %v475
    %508 = vmatprep.subr.bf16.mxu0 0
    %509 = vmatpush1.bf16.msra.mxu0 %v476
    %510 = vmatprep.subr.bf16.mxu0 0
    %511 = vmatpush1.bf16.msra.mxu0 %v477
    %512 = vmatprep.subr.bf16.mxu0 0
    %513 = vmatpush1.bf16.msra.mxu0 %v478
    %514 = vmatprep.subr.bf16.mxu0 0
    %515 = vmatpush1.bf16.msra.mxu0 %v479
    %516 = vmatprep.subr.bf16.mxu0 0
    %517 = vmatpush1.bf16.msra.mxu0 %v480
    %518 = vmatprep.subr.bf16.mxu0 0
    %519 = vmatpush1.bf16.msra.mxu0 %v481
    %520 = vmatprep.subr.bf16.mxu0 0
    %521 = vmatpush1.bf16.msra.mxu0 %v482
    %522 = vmatprep.subr.bf16.mxu0 0
    %523 = vmatpush1.bf16.msra.mxu0 %v483
    %524 = vmatprep.subr.bf16.mxu0 0
    %525 = vmatpush1.bf16.msra.mxu0 %v484
    %526 = vmatprep.subr.bf16.mxu0 0
    %527 = vmatpush1.bf16.msra.mxu0 %v485
    %528 = vmatprep.subr.bf16.mxu0 0
    %529 = vmatpush1.bf16.msra.mxu0 %v486
    %530 = vmatprep.subr.bf16.mxu0 0
    %531 = vmatpush1.bf16.msra.mxu0 %v504
    %532 = vmatprep.subr.bf16.mxu0 0
    %533 = vmatpush1.bf16.msra.mxu0 0
    %534 = vmatprep.subr.bf16.mxu0 0
    %535 = vmatpush1.bf16.msra.mxu0 0
    %536 = vmatprep.subr.bf16.mxu0 0
    %537 = vmatpush1.bf16.msra.mxu0 0
    %538 = vmatprep.mubr.bf16.mxu0 %v501
    %539 = vmatmul.mubr.bf16.gmra.mrb[0].mxu0 %v239
    %v540 = vpop.f32.mrb[0].mxu0
    %v541 = vadd.f32 %v420, %v540
    %v542 = vpop.f32.mrb[0].mxu0
    %v543 = vpop.f32.mrb[0].mxu0
    %v544 = vpop.f32.mrb[0].mxu0
    %545 = vdwg.mxu0
    %v546 = vrot.slane %v138, 2
    %v547 = vrot.slane %v139, 2
    %v550 = vrot.slane %v228, 1
    %v551 = vrot.slane %v229, 1
    %v554 = vsel %vm236, %v546, %v550
    %v555 = vsel %vm236, %v547, %v551
    %v556 = vpack.c.bf16 %v554, %v554
    %v557 = vpack.c.bf16 %v555, %v555
    %s558 = scalar_lea.vmem %s3, 200
    %v559 = vld [vmem:[%s558] sm:$0xf]
    %v560 = vld [vmem:[%s558 + $0x4] sm:$0xf]
    %v561 = vld [vmem:[%s558 + $0x8] sm:$0xf]
    %v562 = vld [vmem:[%s558 + $0xc] sm:$0xf]
    %v563 = vld [vmem:[%s558 + $0x10] sm:$0xf]
    %v564 = vld [vmem:[%s558 + $0x14] sm:$0xf]
    %v565 = vld [vmem:[%s558 + $0x18] sm:$0xf]
    %v566 = vld [vmem:[%s558 + $0x1c] sm:$0xf]
    %v567 = vld [vmem:[%s558 + $0x20] sm:$0xf]
    %v568 = vld [vmem:[%s558 + $0x24] sm:$0xf]
    %v569 = vld [vmem:[%s558 + $0x28] sm:$0xf]
    %v570 = vld [vmem:[%s558 + $0x2c] sm:$0xf]
    %v571 = vld [vmem:[%s558 + $0x30] sm:$0xf]
    %v572 = vld [vmem:[%s558 + $0x34] sm:$0xf]
    %v573 = vld [vmem:[%s558 + $0x38] sm:$0xf]
    %v574 = vld [vmem:[%s558 + $0x3c] sm:$0xf]
    %v575 = vld [vmem:[%s558 + $0x40] sm:$0xf]
    %v576 = vld [vmem:[%s558 + $0x44] sm:$0xf]
    %v577 = vld [vmem:[%s558 + $0x48] sm:$0xf]
    %v578 = vld [vmem:[%s558 + $0x4c] sm:$0xf]
    %v579 = vld [vmem:[%s558 + $0x50] sm:$0xf]
    %v580 = vld [vmem:[%s558 + $0x54] sm:$0xf]
    %v581 = vld [vmem:[%s558 + $0x58] sm:$0xf]
    %v582 = vld [vmem:[%s558 + $0x5c] sm:$0xf]
    %v583 = vld [vmem:[%s558 + $0x60] sm:$0x3]
    %v609 = vunpack.c.l.b16 %v559
    %v610 = vunpack.c.l.b16 %v560
    %v611 = vunpack.c.l.b16 %v561
    %v612 = vunpack.c.l.b16 %v562
    %v613 = vunpack.c.l.b16 %v563
    %v614 = vunpack.c.l.b16 %v564
    %v615 = vunpack.c.l.b16 %v565
    %v616 = vunpack.c.l.b16 %v566
    %v617 = vunpack.c.l.b16 %v567
    %v618 = vunpack.c.l.b16 %v568
    %v619 = vunpack.c.l.b16 %v569
    %v620 = vunpack.c.l.b16 %v570
    %v621 = vunpack.c.l.b16 %v571
    %v622 = vunpack.c.l.b16 %v572
    %v623 = vunpack.c.l.b16 %v573
    %v624 = vunpack.c.l.b16 %v574
    %v625 = vunpack.c.l.b16 %v575
    %v626 = vunpack.c.l.b16 %v576
    %v627 = vunpack.c.l.b16 %v577
    %v628 = vunpack.c.l.b16 %v578
    %v629 = vunpack.c.l.b16 %v579
    %v630 = vunpack.c.l.b16 %v580
    %v631 = vunpack.c.l.b16 %v581
    %v632 = vunpack.c.l.b16 %v582
    %v633 = vunpack.c.l.b16 %v583
    %v634 = vpack.c.b16 %v610, %v609
    %v635 = vpack.c.b16 %v612, %v611
    %v636 = vpack.c.b16 %v614, %v613
    %v637 = vpack.c.b16 %v616, %v615
    %v638 = vpack.c.b16 %v618, %v617
    %v639 = vpack.c.b16 %v620, %v619
    %v640 = vpack.c.b16 %v622, %v621
    %v641 = vpack.c.b16 %v624, %v623
    %v642 = vpack.c.b16 %v626, %v625
    %v643 = vpack.c.b16 %v628, %v627
    %v644 = vpack.c.b16 %v630, %v629
    %v645 = vpack.c.b16 %v632, %v631
    %v646 = vpack.c.b16 %v633, %v633
    %v660 = vsel %vm377, %v557, 0
    %v663 = vsel %vm381, %v646, 0
    %665 = vmatprep.subr.bf16.mxu0 0
    %666 = vmatpush1.bf16.msra.mxu0 %v634
    %667 = vmatprep.subr.bf16.mxu0 0
    %668 = vmatpush1.bf16.msra.mxu0 %v635
    %669 = vmatprep.subr.bf16.mxu0 0
    %670 = vmatpush1.bf16.msra.mxu0 %v636
    %671 = vmatprep.subr.bf16.mxu0 0
    %672 = vmatpush1.bf16.msra.mxu0 %v637
    %673 = vmatprep.subr.bf16.mxu0 0
    %674 = vmatpush1.bf16.msra.mxu0 %v638
    %675 = vmatprep.subr.bf16.mxu0 0
    %676 = vmatpush1.bf16.msra.mxu0 %v639
    %677 = vmatprep.subr.bf16.mxu0 0
    %678 = vmatpush1.bf16.msra.mxu0 %v640
    %679 = vmatprep.subr.bf16.mxu0 0
    %680 = vmatpush1.bf16.msra.mxu0 %v641
    %681 = vmatprep.subr.bf16.mxu0 0
    %682 = vmatpush1.bf16.msra.mxu0 %v642
    %683 = vmatprep.subr.bf16.mxu0 0
    %684 = vmatpush1.bf16.msra.mxu0 %v643
    %685 = vmatprep.subr.bf16.mxu0 0
    %686 = vmatpush1.bf16.msra.mxu0 %v644
    %687 = vmatprep.subr.bf16.mxu0 0
    %688 = vmatpush1.bf16.msra.mxu0 %v645
    %689 = vmatprep.subr.bf16.mxu0 0
    %690 = vmatpush1.bf16.msra.mxu0 %v663
    %691 = vmatprep.subr.bf16.mxu0 0
    %692 = vmatpush1.bf16.msra.mxu0 0
    %693 = vmatprep.subr.bf16.mxu0 0
    %694 = vmatpush1.bf16.msra.mxu0 0
    %695 = vmatprep.subr.bf16.mxu0 0
    %696 = vmatpush1.bf16.msra.mxu0 0
    %697 = vmatprep.mubr.bf16.mxu0 %v660
    %698 = vmatmul.mubr.bf16.gmra.mrb[0].mxu0 %v556
    %v699 = vpop.f32.mrb[0].mxu0
    %v700 = vadd.f32 0.0, %v699
    %v701 = vpop.f32.mrb[0].mxu0
    %v702 = vpop.f32.mrb[0].mxu0
    %v703 = vpop.f32.mrb[0].mxu0
    %704 = vdwg.mxu0
    %v705 = vadd.f32 %v541, %v700
    %v706 = vrot.slane %v138, 3
    %v707 = vrot.slane %v139, 3
    %v710 = vrot.slane %v228, 2
    %v711 = vrot.slane %v229, 2
    %v714 = vsel %vm236, %v706, %v710
    %v715 = vsel %vm236, %v707, %v711
    %v716 = vpack.c.bf16 %v714, %v714
    %v717 = vpack.c.bf16 %v715, %v715
    %s718 = scalar_lea.vmem %s3, 300
    %v719 = vld [vmem:[%s718] sm:$0xf]
    %v720 = vld [vmem:[%s718 + $0x4] sm:$0xf]
    %v721 = vld [vmem:[%s718 + $0x8] sm:$0xf]
    %v722 = vld [vmem:[%s718 + $0xc] sm:$0xf]
    %v723 = vld [vmem:[%s718 + $0x10] sm:$0xf]
    %v724 = vld [vmem:[%s718 + $0x14] sm:$0xf]
    %v725 = vld [vmem:[%s718 + $0x18] sm:$0xf]
    %v726 = vld [vmem:[%s718 + $0x1c] sm:$0xf]
    %v727 = vld [vmem:[%s718 + $0x20] sm:$0xf]
    %v728 = vld [vmem:[%s718 + $0x24] sm:$0xf]
    %v729 = vld [vmem:[%s718 + $0x28] sm:$0xf]
    %v730 = vld [vmem:[%s718 + $0x2c] sm:$0xf]
    %v731 = vld [vmem:[%s718 + $0x30] sm:$0xf]
    %v732 = vld [vmem:[%s718 + $0x34] sm:$0xf]
    %v733 = vld [vmem:[%s718 + $0x38] sm:$0xf]
    %v734 = vld [vmem:[%s718 + $0x3c] sm:$0xf]
    %v735 = vld [vmem:[%s718 + $0x40] sm:$0xf]
    %v736 = vld [vmem:[%s718 + $0x44] sm:$0xf]
    %v737 = vld [vmem:[%s718 + $0x48] sm:$0xf]
    %v738 = vld [vmem:[%s718 + $0x4c] sm:$0xf]
    %v739 = vld [vmem:[%s718 + $0x50] sm:$0xf]
    %v740 = vld [vmem:[%s718 + $0x54] sm:$0xf]
    %v741 = vld [vmem:[%s718 + $0x58] sm:$0xf]
    %v742 = vld [vmem:[%s718 + $0x5c] sm:$0xf]
    %v743 = vld [vmem:[%s718 + $0x60] sm:$0x3]
    %v769 = vunpack.c.l.b16 %v719
    %v770 = vunpack.c.l.b16 %v720
    %v771 = vunpack.c.l.b16 %v721
    %v772 = vunpack.c.l.b16 %v722
    %v773 = vunpack.c.l.b16 %v723
    %v774 = vunpack.c.l.b16 %v724
    %v775 = vunpack.c.l.b16 %v725
    %v776 = vunpack.c.l.b16 %v726
    %v777 = vunpack.c.l.b16 %v727
    %v778 = vunpack.c.l.b16 %v728
    %v779 = vunpack.c.l.b16 %v729
    %v780 = vunpack.c.l.b16 %v730
    %v781 = vunpack.c.l.b16 %v731
    %v782 = vunpack.c.l.b16 %v732
    %v783 = vunpack.c.l.b16 %v733
    %v784 = vunpack.c.l.b16 %v734
    %v785 = vunpack.c.l.b16 %v735
    %v786 = vunpack.c.l.b16 %v736
    %v787 = vunpack.c.l.b16 %v737
    %v788 = vunpack.c.l.b16 %v738
    %v789 = vunpack.c.l.b16 %v739
    %v790 = vunpack.c.l.b16 %v740
    %v791 = vunpack.c.l.b16 %v741
    %v792 = vunpack.c.l.b16 %v742
    %v793 = vunpack.c.l.b16 %v743
    %v794 = vpack.c.b16 %v770, %v769
    %v795 = vpack.c.b16 %v772, %v771
    %v796 = vpack.c.b16 %v774, %v773
    %v797 = vpack.c.b16 %v776, %v775
    %v798 = vpack.c.b16 %v778, %v777
    %v799 = vpack.c.b16 %v780, %v779
    %v800 = vpack.c.b16 %v782, %v781
    %v801 = vpack.c.b16 %v784, %v783
    %v802 = vpack.c.b16 %v786, %v785
    %v803 = vpack.c.b16 %v788, %v787
    %v804 = vpack.c.b16 %v790, %v789
    %v805 = vpack.c.b16 %v792, %v791
    %v806 = vpack.c.b16 %v793, %v793
    %v820 = vsel %vm377, %v717, 0
    %v823 = vsel %vm381, %v806, 0
    %825 = vmatprep.subr.bf16.mxu0 0
    %826 = vmatpush1.bf16.msra.mxu0 %v794
    %827 = vmatprep.subr.bf16.mxu0 0
    %828 = vmatpush1.bf16.msra.mxu0 %v795
    %829 = vmatprep.subr.bf16.mxu0 0
    %830 = vmatpush1.bf16.msra.mxu0 %v796
    %831 = vmatprep.subr.bf16.mxu0 0
    %832 = vmatpush1.bf16.msra.mxu0 %v797
    %833 = vmatprep.subr.bf16.mxu0 0
    %834 = vmatpush1.bf16.msra.mxu0 %v798
    %835 = vmatprep.subr.bf16.mxu0 0
    %836 = vmatpush1.bf16.msra.mxu0 %v799
    %837 = vmatprep.subr.bf16.mxu0 0
    %838 = vmatpush1.bf16.msra.mxu0 %v800
    %839 = vmatprep.subr.bf16.mxu0 0
    %840 = vmatpush1.bf16.msra.mxu0 %v801
    %841 = vmatprep.subr.bf16.mxu0 0
    %842 = vmatpush1.bf16.msra.mxu0 %v802
    %843 = vmatprep.subr.bf16.mxu0 0
    %844 = vmatpush1.bf16.msra.mxu0 %v803
    %845 = vmatprep.subr.bf16.mxu0 0
    %846 = vmatpush1.bf16.msra.mxu0 %v804
    %847 = vmatprep.subr.bf16.mxu0 0
    %848 = vmatpush1.bf16.msra.mxu0 %v805
    %849 = vmatprep.subr.bf16.mxu0 0
    %850 = vmatpush1.bf16.msra.mxu0 %v823
    %851 = vmatprep.subr.bf16.mxu0 0
    %852 = vmatpush1.bf16.msra.mxu0 0
    %853 = vmatprep.subr.bf16.mxu0 0
    %854 = vmatpush1.bf16.msra.mxu0 0
    %855 = vmatprep.subr.bf16.mxu0 0
    %856 = vmatpush1.bf16.msra.mxu0 0
    %857 = vmatprep.mubr.bf16.mxu0 %v820
    %858 = vmatmul.mubr.bf16.gmra.mrb[0].mxu0 %v716
    %v859 = vpop.f32.mrb[0].mxu0
    %v860 = vadd.f32 0.0, %v859
    %v861 = vpop.f32.mrb[0].mxu0
    %v862 = vpop.f32.mrb[0].mxu0
    %v863 = vpop.f32.mrb[0].mxu0
    %864 = vdwg.mxu0
    %v865 = vadd.f32 %v705, %v860
    %v866 = vrot.slane %v138, 4
    %v867 = vrot.slane %v139, 4
    %v870 = vrot.slane %v228, 3
    %v871 = vrot.slane %v229, 3
    %v874 = vsel %vm236, %v866, %v870
    %v875 = vsel %vm236, %v867, %v871
    %v876 = vpack.c.bf16 %v874, %v874
    %v877 = vpack.c.bf16 %v875, %v875
    %s878 = scalar_lea.vmem %s3, 400
    %v879 = vld [vmem:[%s878] sm:$0xf]
    %v880 = vld [vmem:[%s878 + $0x4] sm:$0xf]
    %v881 = vld [vmem:[%s878 + $0x8] sm:$0xf]
    %v882 = vld [vmem:[%s878 + $0xc] sm:$0xf]
    %v883 = vld [vmem:[%s878 + $0x10] sm:$0xf]
    %v884 = vld [vmem:[%s878 + $0x14] sm:$0xf]
    %v885 = vld [vmem:[%s878 + $0x18] sm:$0xf]
    %v886 = vld [vmem:[%s878 + $0x1c] sm:$0xf]
    %v887 = vld [vmem:[%s878 + $0x20] sm:$0xf]
    %v888 = vld [vmem:[%s878 + $0x24] sm:$0xf]
    %v889 = vld [vmem:[%s878 + $0x28] sm:$0xf]
    %v890 = vld [vmem:[%s878 + $0x2c] sm:$0xf]
    %v891 = vld [vmem:[%s878 + $0x30] sm:$0xf]
    %v892 = vld [vmem:[%s878 + $0x34] sm:$0xf]
    %v893 = vld [vmem:[%s878 + $0x38] sm:$0xf]
    %v894 = vld [vmem:[%s878 + $0x3c] sm:$0xf]
    %v895 = vld [vmem:[%s878 + $0x40] sm:$0xf]
    %v896 = vld [vmem:[%s878 + $0x44] sm:$0xf]
    %v897 = vld [vmem:[%s878 + $0x48] sm:$0xf]
    %v898 = vld [vmem:[%s878 + $0x4c] sm:$0xf]
    %v899 = vld [vmem:[%s878 + $0x50] sm:$0xf]
    %v900 = vld [vmem:[%s878 + $0x54] sm:$0xf]
    %v901 = vld [vmem:[%s878 + $0x58] sm:$0xf]
    %v902 = vld [vmem:[%s878 + $0x5c] sm:$0xf]
    %v903 = vld [vmem:[%s878 + $0x60] sm:$0x3]
    %v929 = vunpack.c.l.b16 %v879
    %v930 = vunpack.c.l.b16 %v880
    %v931 = vunpack.c.l.b16 %v881
    %v932 = vunpack.c.l.b16 %v882
    %v933 = vunpack.c.l.b16 %v883
    %v934 = vunpack.c.l.b16 %v884
    %v935 = vunpack.c.l.b16 %v885
    %v936 = vunpack.c.l.b16 %v886
    %v937 = vunpack.c.l.b16 %v887
    %v938 = vunpack.c.l.b16 %v888
    %v939 = vunpack.c.l.b16 %v889
    %v940 = vunpack.c.l.b16 %v890
    %v941 = vunpack.c.l.b16 %v891
    %v942 = vunpack.c.l.b16 %v892
    %v943 = vunpack.c.l.b16 %v893
    %v944 = vunpack.c.l.b16 %v894
    %v945 = vunpack.c.l.b16 %v895
    %v946 = vunpack.c.l.b16 %v896
    %v947 = vunpack.c.l.b16 %v897
    %v948 = vunpack.c.l.b16 %v898
    %v949 = vunpack.c.l.b16 %v899
    %v950 = vunpack.c.l.b16 %v900
    %v951 = vunpack.c.l.b16 %v901
    %v952 = vunpack.c.l.b16 %v902
    %v953 = vunpack.c.l.b16 %v903
    %v954 = vpack.c.b16 %v930, %v929
    %v955 = vpack.c.b16 %v932, %v931
    %v956 = vpack.c.b16 %v934, %v933
    %v957 = vpack.c.b16 %v936, %v935
    %v958 = vpack.c.b16 %v938, %v937
    %v959 = vpack.c.b16 %v940, %v939
    %v960 = vpack.c.b16 %v942, %v941
    %v961 = vpack.c.b16 %v944, %v943
    %v962 = vpack.c.b16 %v946, %v945
    %v963 = vpack.c.b16 %v948, %v947
    %v964 = vpack.c.b16 %v950, %v949
    %v965 = vpack.c.b16 %v952, %v951
    %v966 = vpack.c.b16 %v953, %v953
    %v980 = vsel %vm377, %v877, 0
    %v983 = vsel %vm381, %v966, 0
    %985 = vmatprep.subr.bf16.mxu0 0
    %986 = vmatpush1.bf16.msra.mxu0 %v954
    %987 = vmatprep.subr.bf16.mxu0 0
    %988 = vmatpush1.bf16.msra.mxu0 %v955
    %989 = vmatprep.subr.bf16.mxu0 0
    %990 = vmatpush1.bf16.msra.mxu0 %v956
    %991 = vmatprep.subr.bf16.mxu0 0
    %992 = vmatpush1.bf16.msra.mxu0 %v957
    %993 = vmatprep.subr.bf16.mxu0 0
    %994 = vmatpush1.bf16.msra.mxu0 %v958
    %995 = vmatprep.subr.bf16.mxu0 0
    %996 = vmatpush1.bf16.msra.mxu0 %v959
    %997 = vmatprep.subr.bf16.mxu0 0
    %998 = vmatpush1.bf16.msra.mxu0 %v960
    %999 = vmatprep.subr.bf16.mxu0 0
    %1000 = vmatpush1.bf16.msra.mxu0 %v961
    %1001 = vmatprep.subr.bf16.mxu0 0
    %1002 = vmatpush1.bf16.msra.mxu0 %v962
    %1003 = vmatprep.subr.bf16.mxu0 0
    %1004 = vmatpush1.bf16.msra.mxu0 %v963
    %1005 = vmatprep.subr.bf16.mxu0 0
    %1006 = vmatpush1.bf16.msra.mxu0 %v964
    %1007 = vmatprep.subr.bf16.mxu0 0
    %1008 = vmatpush1.bf16.msra.mxu0 %v965
    %1009 = vmatprep.subr.bf16.mxu0 0
    %1010 = vmatpush1.bf16.msra.mxu0 %v983
    %1011 = vmatprep.subr.bf16.mxu0 0
    %1012 = vmatpush1.bf16.msra.mxu0 0
    %1013 = vmatprep.subr.bf16.mxu0 0
    %1014 = vmatpush1.bf16.msra.mxu0 0
    %1015 = vmatprep.subr.bf16.mxu0 0
    %1016 = vmatpush1.bf16.msra.mxu0 0
    %1017 = vmatprep.mubr.bf16.mxu0 %v980
    %1018 = vmatmul.mubr.bf16.gmra.mrb[0].mxu0 %v876
    %v1019 = vpop.f32.mrb[0].mxu0
    %v1020 = vadd.f32 0.0, %v1019
    %v1021 = vpop.f32.mrb[0].mxu0
    %v1022 = vpop.f32.mrb[0].mxu0
    %v1023 = vpop.f32.mrb[0].mxu0
    %1024 = vdwg.mxu0
    %v1025 = vadd.f32 %v865, %v1020
    %v1026 = vrot.slane %v138, 5
    %v1027 = vrot.slane %v139, 5
    %v1030 = vrot.slane %v228, 4
    %v1031 = vrot.slane %v229, 4
    %v1034 = vsel %vm236, %v1026, %v1030
    %v1035 = vsel %vm236, %v1027, %v1031
    %v1036 = vpack.c.bf16 %v1034, %v1034
    %v1037 = vpack.c.bf16 %v1035, %v1035
    %s1038 = scalar_lea.vmem %s3, 500
    %v1039 = vld [vmem:[%s1038] sm:$0xf]
    %v1040 = vld [vmem:[%s1038 + $0x4] sm:$0xf]
    %v1041 = vld [vmem:[%s1038 + $0x8] sm:$0xf]
    %v1042 = vld [vmem:[%s1038 + $0xc] sm:$0xf]
    %v1043 = vld [vmem:[%s1038 + $0x10] sm:$0xf]
    %v1044 = vld [vmem:[%s1038 + $0x14] sm:$0xf]
    %v1045 = vld [vmem:[%s1038 + $0x18] sm:$0xf]
    %v1046 = vld [vmem:[%s1038 + $0x1c] sm:$0xf]
    %v1047 = vld [vmem:[%s1038 + $0x20] sm:$0xf]
    %v1048 = vld [vmem:[%s1038 + $0x24] sm:$0xf]
    %v1049 = vld [vmem:[%s1038 + $0x28] sm:$0xf]
    %v1050 = vld [vmem:[%s1038 + $0x2c] sm:$0xf]
    %v1051 = vld [vmem:[%s1038 + $0x30] sm:$0xf]
    %v1052 = vld [vmem:[%s1038 + $0x34] sm:$0xf]
    %v1053 = vld [vmem:[%s1038 + $0x38] sm:$0xf]
    %v1054 = vld [vmem:[%s1038 + $0x3c] sm:$0xf]
    %v1055 = vld [vmem:[%s1038 + $0x40] sm:$0xf]
    %v1056 = vld [vmem:[%s1038 + $0x44] sm:$0xf]
    %v1057 = vld [vmem:[%s1038 + $0x48] sm:$0xf]
    %v1058 = vld [vmem:[%s1038 + $0x4c] sm:$0xf]
    %v1059 = vld [vmem:[%s1038 + $0x50] sm:$0xf]
    %v1060 = vld [vmem:[%s1038 + $0x54] sm:$0xf]
    %v1061 = vld [vmem:[%s1038 + $0x58] sm:$0xf]
    %v1062 = vld [vmem:[%s1038 + $0x5c] sm:$0xf]
    %v1063 = vld [vmem:[%s1038 + $0x60] sm:$0x3]
    %v1089 = vunpack.c.l.b16 %v1039
    %v1090 = vunpack.c.l.b16 %v1040
    %v1091 = vunpack.c.l.b16 %v1041
    %v1092 = vunpack.c.l.b16 %v1042
    %v1093 = vunpack.c.l.b16 %v1043
    %v1094 = vunpack.c.l.b16 %v1044
    %v1095 = vunpack.c.l.b16 %v1045
    %v1096 = vunpack.c.l.b16 %v1046
    %v1097 = vunpack.c.l.b16 %v1047
    %v1098 = vunpack.c.l.b16 %v1048
    %v1099 = vunpack.c.l.b16 %v1049
    %v1100 = vunpack.c.l.b16 %v1050
    %v1101 = vunpack.c.l.b16 %v1051
    %v1102 = vunpack.c.l.b16 %v1052
    %v1103 = vunpack.c.l.b16 %v1053
    %v1104 = vunpack.c.l.b16 %v1054
    %v1105 = vunpack.c.l.b16 %v1055
    %v1106 = vunpack.c.l.b16 %v1056
    %v1107 = vunpack.c.l.b16 %v1057
    %v1108 = vunpack.c.l.b16 %v1058
    %v1109 = vunpack.c.l.b16 %v1059
    %v1110 = vunpack.c.l.b16 %v1060
    %v1111 = vunpack.c.l.b16 %v1061
    %v1112 = vunpack.c.l.b16 %v1062
    %v1113 = vunpack.c.l.b16 %v1063
    %v1114 = vpack.c.b16 %v1090, %v1089
    %v1115 = vpack.c.b16 %v1092, %v1091
    %v1116 = vpack.c.b16 %v1094, %v1093
    %v1117 = vpack.c.b16 %v1096, %v1095
    %v1118 = vpack.c.b16 %v1098, %v1097
    %v1119 = vpack.c.b16 %v1100, %v1099
    %v1120 = vpack.c.b16 %v1102, %v1101
    %v1121 = vpack.c.b16 %v1104, %v1103
    %v1122 = vpack.c.b16 %v1106, %v1105
    %v1123 = vpack.c.b16 %v1108, %v1107
    %v1124 = vpack.c.b16 %v1110, %v1109
    %v1125 = vpack.c.b16 %v1112, %v1111
    %v1126 = vpack.c.b16 %v1113, %v1113
    %v1140 = vsel %vm377, %v1037, 0
    %v1143 = vsel %vm381, %v1126, 0
    %1145 = vmatprep.subr.bf16.mxu0 0
    %1146 = vmatpush1.bf16.msra.mxu0 %v1114
    %1147 = vmatprep.subr.bf16.mxu0 0
    %1148 = vmatpush1.bf16.msra.mxu0 %v1115
    %1149 = vmatprep.subr.bf16.mxu0 0
    %1150 = vmatpush1.bf16.msra.mxu0 %v1116
    %1151 = vmatprep.subr.bf16.mxu0 0
    %1152 = vmatpush1.bf16.msra.mxu0 %v1117
    %1153 = vmatprep.subr.bf16.mxu0 0
    %1154 = vmatpush1.bf16.msra.mxu0 %v1118
    %1155 = vmatprep.subr.bf16.mxu0 0
    %1156 = vmatpush1.bf16.msra.mxu0 %v1119
    %1157 = vmatprep.subr.bf16.mxu0 0
    %1158 = vmatpush1.bf16.msra.mxu0 %v1120
    %1159 = vmatprep.subr.bf16.mxu0 0
    %1160 = vmatpush1.bf16.msra.mxu0 %v1121
    %1161 = vmatprep.subr.bf16.mxu0 0
    %1162 = vmatpush1.bf16.msra.mxu0 %v1122
    %1163 = vmatprep.subr.bf16.mxu0 0
    %1164 = vmatpush1.bf16.msra.mxu0 %v1123
    %1165 = vmatprep.subr.bf16.mxu0 0
    %1166 = vmatpush1.bf16.msra.mxu0 %v1124
    %1167 = vmatprep.subr.bf16.mxu0 0
    %1168 = vmatpush1.bf16.msra.mxu0 %v1125
    %1169 = vmatprep.subr.bf16.mxu0 0
    %1170 = vmatpush1.bf16.msra.mxu0 %v1143
    %1171 = vmatprep.subr.bf16.mxu0 0
    %1172 = vmatpush1.bf16.msra.mxu0 0
    %1173 = vmatprep.subr.bf16.mxu0 0
    %1174 = vmatpush1.bf16.msra.mxu0 0
    %1175 = vmatprep.subr.bf16.mxu0 0
    %1176 = vmatpush1.bf16.msra.mxu0 0
    %1177 = vmatprep.mubr.bf16.mxu0 %v1140
    %1178 = vmatmul.mubr.bf16.gmra.mrb[0].mxu0 %v1036
    %v1179 = vpop.f32.mrb[0].mxu0
    %v1180 = vadd.f32 0.0, %v1179
    %v1181 = vpop.f32.mrb[0].mxu0
    %v1182 = vpop.f32.mrb[0].mxu0
    %v1183 = vpop.f32.mrb[0].mxu0
    %1184 = vdwg.mxu0
    %v1185 = vadd.f32 %v1025, %v1180
    %v1186 = vrot.slane %v138, 6
    %v1187 = vrot.slane %v139, 6
    %v1190 = vrot.slane %v228, 5
    %v1191 = vrot.slane %v229, 5
    %v1194 = vsel %vm236, %v1186, %v1190
    %v1195 = vsel %vm236, %v1187, %v1191
    %v1196 = vpack.c.bf16 %v1194, %v1194
    %v1197 = vpack.c.bf16 %v1195, %v1195
    %s1198 = scalar_lea.vmem %s3, 600
    %v1199 = vld [vmem:[%s1198] sm:$0xf]
    %v1200 = vld [vmem:[%s1198 + $0x4] sm:$0xf]
    %v1201 = vld [vmem:[%s1198 + $0x8] sm:$0xf]
    %v1202 = vld [vmem:[%s1198 + $0xc] sm:$0xf]
    %v1203 = vld [vmem:[%s1198 + $0x10] sm:$0xf]
    %v1204 = vld [vmem:[%s1198 + $0x14] sm:$0xf]
    %v1205 = vld [vmem:[%s1198 + $0x18] sm:$0xf]
    %v1206 = vld [vmem:[%s1198 + $0x1c] sm:$0xf]
    %v1207 = vld [vmem:[%s1198 + $0x20] sm:$0xf]
    %v1208 = vld [vmem:[%s1198 + $0x24] sm:$0xf]
    %v1209 = vld [vmem:[%s1198 + $0x28] sm:$0xf]
    %v1210 = vld [vmem:[%s1198 + $0x2c] sm:$0xf]
    %v1211 = vld [vmem:[%s1198 + $0x30] sm:$0xf]
    %v1212 = vld [vmem:[%s1198 + $0x34] sm:$0xf]
    %v1213 = vld [vmem:[%s1198 + $0x38] sm:$0xf]
    %v1214 = vld [vmem:[%s1198 + $0x3c] sm:$0xf]
    %v1215 = vld [vmem:[%s1198 + $0x40] sm:$0xf]
    %v1216 = vld [vmem:[%s1198 + $0x44] sm:$0xf]
    %v1217 = vld [vmem:[%s1198 + $0x48] sm:$0xf]
    %v1218 = vld [vmem:[%s1198 + $0x4c] sm:$0xf]
    %v1219 = vld [vmem:[%s1198 + $0x50] sm:$0xf]
    %v1220 = vld [vmem:[%s1198 + $0x54] sm:$0xf]
    %v1221 = vld [vmem:[%s1198 + $0x58] sm:$0xf]
    %v1222 = vld [vmem:[%s1198 + $0x5c] sm:$0xf]
    %v1223 = vld [vmem:[%s1198 + $0x60] sm:$0x3]
    %v1249 = vunpack.c.l.b16 %v1199
    %v1250 = vunpack.c.l.b16 %v1200
    %v1251 = vunpack.c.l.b16 %v1201
    %v1252 = vunpack.c.l.b16 %v1202
    %v1253 = vunpack.c.l.b16 %v1203
    %v1254 = vunpack.c.l.b16 %v1204
    %v1255 = vunpack.c.l.b16 %v1205
    %v1256 = vunpack.c.l.b16 %v1206
    %v1257 = vunpack.c.l.b16 %v1207
    %v1258 = vunpack.c.l.b16 %v1208
    %v1259 = vunpack.c.l.b16 %v1209
    %v1260 = vunpack.c.l.b16 %v1210
    %v1261 = vunpack.c.l.b16 %v1211
    %v1262 = vunpack.c.l.b16 %v1212
    %v1263 = vunpack.c.l.b16 %v1213
    %v1264 = vunpack.c.l.b16 %v1214
    %v1265 = vunpack.c.l.b16 %v1215
    %v1266 = vunpack.c.l.b16 %v1216
    %v1267 = vunpack.c.l.b16 %v1217
    %v1268 = vunpack.c.l.b16 %v1218
    %v1269 = vunpack.c.l.b16 %v1219
    %v1270 = vunpack.c.l.b16 %v1220
    %v1271 = vunpack.c.l.b16 %v1221
    %v1272 = vunpack.c.l.b16 %v1222
    %v1273 = vunpack.c.l.b16 %v1223
    %v1274 = vpack.c.b16 %v1250, %v1249
    %v1275 = vpack.c.b16 %v1252, %v1251
    %v1276 = vpack.c.b16 %v1254, %v1253
    %v1277 = vpack.c.b16 %v1256, %v1255
    %v1278 = vpack.c.b16 %v1258, %v1257
    %v1279 = vpack.c.b16 %v1260, %v1259
    %v1280 = vpack.c.b16 %v1262, %v1261
    %v1281 = vpack.c.b16 %v1264, %v1263
    %v1282 = vpack.c.b16 %v1266, %v1265
    %v1283 = vpack.c.b16 %v1268, %v1267
    %v1284 = vpack.c.b16 %v1270, %v1269
    %v1285 = vpack.c.b16 %v1272, %v1271
    %v1286 = vpack.c.b16 %v1273, %v1273
    %v1300 = vsel %vm377, %v1197, 0
    %v1303 = vsel %vm381, %v1286, 0
    %1305 = vmatprep.subr.bf16.mxu0 0
    %1306 = vmatpush1.bf16.msra.mxu0 %v1274
    %1307 = vmatprep.subr.bf16.mxu0 0
    %1308 = vmatpush1.bf16.msra.mxu0 %v1275
    %1309 = vmatprep.subr.bf16.mxu0 0
    %1310 = vmatpush1.bf16.msra.mxu0 %v1276
    %1311 = vmatprep.subr.bf16.mxu0 0
    %1312 = vmatpush1.bf16.msra.mxu0 %v1277
    %1313 = vmatprep.subr.bf16.mxu0 0
    %1314 = vmatpush1.bf16.msra.mxu0 %v1278
    %1315 = vmatprep.subr.bf16.mxu0 0
    %1316 = vmatpush1.bf16.msra.mxu0 %v1279
    %1317 = vmatprep.subr.bf16.mxu0 0
    %1318 = vmatpush1.bf16.msra.mxu0 %v1280
    %1319 = vmatprep.subr.bf16.mxu0 0
    %1320 = vmatpush1.bf16.msra.mxu0 %v1281
    %1321 = vmatprep.subr.bf16.mxu0 0
    %1322 = vmatpush1.bf16.msra.mxu0 %v1282
    %1323 = vmatprep.subr.bf16.mxu0 0
    %1324 = vmatpush1.bf16.msra.mxu0 %v1283
    %1325 = vmatprep.subr.bf16.mxu0 0
    %1326 = vmatpush1.bf16.msra.mxu0 %v1284
    %1327 = vmatprep.subr.bf16.mxu0 0
    %1328 = vmatpush1.bf16.msra.mxu0 %v1285
    %1329 = vmatprep.subr.bf16.mxu0 0
    %1330 = vmatpush1.bf16.msra.mxu0 %v1303
    %1331 = vmatprep.subr.bf16.mxu0 0
    %1332 = vmatpush1.bf16.msra.mxu0 0
    %1333 = vmatprep.subr.bf16.mxu0 0
    %1334 = vmatpush1.bf16.msra.mxu0 0
    %1335 = vmatprep.subr.bf16.mxu0 0
    %1336 = vmatpush1.bf16.msra.mxu0 0
    %1337 = vmatprep.mubr.bf16.mxu0 %v1300
    %1338 = vmatmul.mubr.bf16.gmra.mrb[0].mxu0 %v1196
    %v1339 = vpop.f32.mrb[0].mxu0
    %v1340 = vadd.f32 0.0, %v1339
    %v1341 = vpop.f32.mrb[0].mxu0
    %v1342 = vpop.f32.mrb[0].mxu0
    %v1343 = vpop.f32.mrb[0].mxu0
    %1344 = vdwg.mxu0
    %v1345 = vadd.f32 %v1185, %v1340
    %v1346 = vrot.slane %v138, 7
    %v1347 = vrot.slane %v139, 7
    %v1350 = vrot.slane %v228, 6
    %v1351 = vrot.slane %v229, 6
    %v1354 = vsel %vm236, %v1346, %v1350
    %v1355 = vsel %vm236, %v1347, %v1351
    %v1356 = vpack.c.bf16 %v1354, %v1354
    %v1357 = vpack.c.bf16 %v1355, %v1355
    %s1358 = scalar_lea.vmem %s3, 700
    %v1359 = vld [vmem:[%s1358] sm:$0xf]
    %v1360 = vld [vmem:[%s1358 + $0x4] sm:$0xf]
    %v1361 = vld [vmem:[%s1358 + $0x8] sm:$0xf]
    %v1362 = vld [vmem:[%s1358 + $0xc] sm:$0xf]
    %v1363 = vld [vmem:[%s1358 + $0x10] sm:$0xf]
    %v1364 = vld [vmem:[%s1358 + $0x14] sm:$0xf]
    %v1365 = vld [vmem:[%s1358 + $0x18] sm:$0xf]
    %v1366 = vld [vmem:[%s1358 + $0x1c] sm:$0xf]
    %v1367 = vld [vmem:[%s1358 + $0x20] sm:$0xf]
    %v1368 = vld [vmem:[%s1358 + $0x24] sm:$0xf]
    %v1369 = vld [vmem:[%s1358 + $0x28] sm:$0xf]
    %v1370 = vld [vmem:[%s1358 + $0x2c] sm:$0xf]
    %v1371 = vld [vmem:[%s1358 + $0x30] sm:$0xf]
    %v1372 = vld [vmem:[%s1358 + $0x34] sm:$0xf]
    %v1373 = vld [vmem:[%s1358 + $0x38] sm:$0xf]
    %v1374 = vld [vmem:[%s1358 + $0x3c] sm:$0xf]
    %v1375 = vld [vmem:[%s1358 + $0x40] sm:$0xf]
    %v1376 = vld [vmem:[%s1358 + $0x44] sm:$0xf]
    %v1377 = vld [vmem:[%s1358 + $0x48] sm:$0xf]
    %v1378 = vld [vmem:[%s1358 + $0x4c] sm:$0xf]
    %v1379 = vld [vmem:[%s1358 + $0x50] sm:$0xf]
    %v1380 = vld [vmem:[%s1358 + $0x54] sm:$0xf]
    %v1381 = vld [vmem:[%s1358 + $0x58] sm:$0xf]
    %v1382 = vld [vmem:[%s1358 + $0x5c] sm:$0xf]
    %v1383 = vld [vmem:[%s1358 + $0x60] sm:$0x3]
    %v1409 = vunpack.c.l.b16 %v1359
    %v1410 = vunpack.c.l.b16 %v1360
    %v1411 = vunpack.c.l.b16 %v1361
    %v1412 = vunpack.c.l.b16 %v1362
    %v1413 = vunpack.c.l.b16 %v1363
    %v1414 = vunpack.c.l.b16 %v1364
    %v1415 = vunpack.c.l.b16 %v1365
    %v1416 = vunpack.c.l.b16 %v1366
    %v1417 = vunpack.c.l.b16 %v1367
    %v1418 = vunpack.c.l.b16 %v1368
    %v1419 = vunpack.c.l.b16 %v1369
    %v1420 = vunpack.c.l.b16 %v1370
    %v1421 = vunpack.c.l.b16 %v1371
    %v1422 = vunpack.c.l.b16 %v1372
    %v1423 = vunpack.c.l.b16 %v1373
    %v1424 = vunpack.c.l.b16 %v1374
    %v1425 = vunpack.c.l.b16 %v1375
    %v1426 = vunpack.c.l.b16 %v1376
    %v1427 = vunpack.c.l.b16 %v1377
    %v1428 = vunpack.c.l.b16 %v1378
    %v1429 = vunpack.c.l.b16 %v1379
    %v1430 = vunpack.c.l.b16 %v1380
    %v1431 = vunpack.c.l.b16 %v1381
    %v1432 = vunpack.c.l.b16 %v1382
    %v1433 = vunpack.c.l.b16 %v1383
    %v1434 = vpack.c.b16 %v1410, %v1409
    %v1435 = vpack.c.b16 %v1412, %v1411
    %v1436 = vpack.c.b16 %v1414, %v1413
    %v1437 = vpack.c.b16 %v1416, %v1415
    %v1438 = vpack.c.b16 %v1418, %v1417
    %v1439 = vpack.c.b16 %v1420, %v1419
    %v1440 = vpack.c.b16 %v1422, %v1421
    %v1441 = vpack.c.b16 %v1424, %v1423
    %v1442 = vpack.c.b16 %v1426, %v1425
    %v1443 = vpack.c.b16 %v1428, %v1427
    %v1444 = vpack.c.b16 %v1430, %v1429
    %v1445 = vpack.c.b16 %v1432, %v1431
    %v1446 = vpack.c.b16 %v1433, %v1433
    %v1460 = vsel %vm377, %v1357, 0
    %v1463 = vsel %vm381, %v1446, 0
    %1465 = vmatprep.subr.bf16.mxu0 0
    %1466 = vmatpush1.bf16.msra.mxu0 %v1434
    %1467 = vmatprep.subr.bf16.mxu0 0
    %1468 = vmatpush1.bf16.msra.mxu0 %v1435
    %1469 = vmatprep.subr.bf16.mxu0 0
    %1470 = vmatpush1.bf16.msra.mxu0 %v1436
    %1471 = vmatprep.subr.bf16.mxu0 0
    %1472 = vmatpush1.bf16.msra.mxu0 %v1437
    %1473 = vmatprep.subr.bf16.mxu0 0
    %1474 = vmatpush1.bf16.msra.mxu0 %v1438
    %1475 = vmatprep.subr.bf16.mxu0 0
    %1476 = vmatpush1.bf16.msra.mxu0 %v1439
    %1477 = vmatprep.subr.bf16.mxu0 0
    %1478 = vmatpush1.bf16.msra.mxu0 %v1440
    %1479 = vmatprep.subr.bf16.mxu0 0
    %1480 = vmatpush1.bf16.msra.mxu0 %v1441
    %1481 = vmatprep.subr.bf16.mxu0 0
    %1482 = vmatpush1.bf16.msra.mxu0 %v1442
    %1483 = vmatprep.subr.bf16.mxu0 0
    %1484 = vmatpush1.bf16.msra.mxu0 %v1443
    %1485 = vmatprep.subr.bf16.mxu0 0
    %1486 = vmatpush1.bf16.msra.mxu0 %v1444
    %1487 = vmatprep.subr.bf16.mxu0 0
    %1488 = vmatpush1.bf16.msra.mxu0 %v1445
    %1489 = vmatprep.subr.bf16.mxu0 0
    %1490 = vmatpush1.bf16.msra.mxu0 %v1463
    %1491 = vmatprep.subr.bf16.mxu0 0
    %1492 = vmatpush1.bf16.msra.mxu0 0
    %1493 = vmatprep.subr.bf16.mxu0 0
    %1494 = vmatpush1.bf16.msra.mxu0 0
    %1495 = vmatprep.subr.bf16.mxu0 0
    %1496 = vmatpush1.bf16.msra.mxu0 0
    %1497 = vmatprep.mubr.bf16.mxu0 %v1460
    %1498 = vmatmul.mubr.bf16.gmra.mrb[0].mxu0 %v1356
    %v1499 = vpop.f32.mrb[0].mxu0
    %v1500 = vadd.f32 0.0, %v1499
    %v1501 = vpop.f32.mrb[0].mxu0
    %v1502 = vpop.f32.mrb[0].mxu0
    %v1503 = vpop.f32.mrb[0].mxu0
    %1504 = vdwg.mxu0
    %v1505 = vadd.f32 %v1345, %v1500
    %v1506 = vld [vmem:[%s4] sm:$0x1]
    %v1508 = vlaneseq
    %v1509 = vshrl.u32 %v1508, 7
    %v1510 = vsub.s32 0, %v1509
    %v1511 = vrot.slane %v1506, %v1510
    %v1513 = vadd.f32 %v1505, %v1511
    %v1514 = vld [vmem:[%s5] sm:$0xff]
    %v1515 = vld [vmem:[%s5 + $0x8] sm:$0xff]
    %v1516 = vld [vmem:[%s5 + $0x10] sm:$0xff]
    %v1517 = vld [vmem:[%s5 + $0x18] sm:$0xff]
    %v1518 = vld [vmem:[%s6] sm:$0x1]
    %v1520 = vlaneseq
    %v1521 = vshrl.u32 %v1520, 7
    %v1522 = vsub.s32 0, %v1521
    %v1523 = vrot.slane %v1518, %v1522
    %vm1525 = vcmask 261120
    %v1527 = vsel %vm1525, %v1513, 0
    %1529 = vmatprep.subr.mxu0 0.0
    %1530 = vmatpush1.msra.mxu0 %v1514
    %1531 = vmatprep.subr.mxu0 0.0
    %1532 = vmatpush1.msra.mxu0 %v1515
    %1533 = vmatprep.subr.mxu0 0.0
    %1534 = vmatpush1.msra.mxu0 %v1516
    %1535 = vmatprep.subr.mxu0 0.0
    %1536 = vmatpush1.msra.mxu0 %v1517
    %1537 = vmatprep.subr.mxu0 0.0
    %1538 = vmatpush1.msra.mxu0 0.0
    %1539 = vmatprep.subr.mxu0 0.0
    %1540 = vmatpush1.msra.mxu0 0.0
    %1541 = vmatprep.subr.mxu0 0.0
    %1542 = vmatpush1.msra.mxu0 0.0
    %1543 = vmatprep.subr.mxu0 0.0
    %1544 = vmatpush1.msra.mxu0 0.0
    %1545 = vmatprep.subr.mxu0 0.0
    %1546 = vmatpush1.msra.mxu0 0.0
    %1547 = vmatprep.subr.mxu0 0.0
    %1548 = vmatpush1.msra.mxu0 0.0
    %1549 = vmatprep.subr.mxu0 0.0
    %1550 = vmatpush1.msra.mxu0 0.0
    %1551 = vmatprep.subr.mxu0 0.0
    %1552 = vmatpush1.msra.mxu0 0.0
    %1553 = vmatprep.subr.mxu0 0.0
    %1554 = vmatpush1.msra.mxu0 0.0
    %1555 = vmatprep.subr.mxu0 0.0
    %1556 = vmatpush1.msra.mxu0 0.0
    %1557 = vmatprep.subr.mxu0 0.0
    %1558 = vmatpush1.msra.mxu0 0.0
    %1559 = vmatprep.subr.mxu0 0.0
    %1560 = vmatpush1.msra.mxu0 0.0
    %1561 = vmatprep.subr.mxu0 0.0
    %1562 = vmatpush1.msra.mxu0 0.0
    %1563 = vmatprep.subr.mxu0 0.0
    %1564 = vmatpush1.msra.mxu0 0.0
    %1565 = vmatprep.subr.mxu0 0.0
    %1566 = vmatpush1.msra.mxu0 0.0
    %1567 = vmatprep.subr.mxu0 0.0
    %1568 = vmatpush1.msra.mxu0 0.0
    %1569 = vmatprep.subr.mxu0 0.0
    %1570 = vmatpush1.msra.mxu0 0.0
    %1571 = vmatprep.subr.mxu0 0.0
    %1572 = vmatpush1.msra.mxu0 0.0
    %1573 = vmatprep.subr.mxu0 0.0
    %1574 = vmatpush1.msra.mxu0 0.0
    %1575 = vmatprep.subr.mxu0 0.0
    %1576 = vmatpush1.msra.mxu0 0.0
    %1577 = vmatprep.subr.mxu0 0.0
    %1578 = vmatpush1.msra.mxu0 0.0
    %1579 = vmatprep.subr.mxu0 0.0
    %1580 = vmatpush1.msra.mxu0 0.0
    %1581 = vmatprep.subr.mxu0 0.0
    %1582 = vmatpush1.msra.mxu0 0.0
    %1583 = vmatprep.subr.mxu0 0.0
    %1584 = vmatpush1.msra.mxu0 0.0
    %1585 = vmatprep.subr.mxu0 0.0
    %1586 = vmatpush1.msra.mxu0 0.0
    %1587 = vmatprep.subr.mxu0 0.0
    %1588 = vmatpush1.msra.mxu0 0.0
    %1589 = vmatprep.subr.mxu0 0.0
    %1590 = vmatpush1.msra.mxu0 0.0
    %1591 = vmatprep.subr.mxu0 0.0
    %1592 = vmatpush1.msra.mxu0 0.0
    %1593 = vmatprep.mubr.f32.mxu0 0.0
    %1594 = vmatmul.mubr.f32.gmra.mrb[0].mxu0 %v1527
    %v1595 = vpop.f32.mrb[0].mxu0
    %v1596 = vadd.f32 %v1523, %v1595
    %v1597 = vpop.f32.mrb[0].mxu0
    %1598 = vdwg.mxu0
    %v1599 = vmax.f32 %v1596, 0.0
    %v1600 = vld [vmem:[%s7] sm:$0xff]
    %v1601 = vld [vmem:[%s7 + $0x8] sm:$0xff]
    %v1602 = vld [vmem:[%s7 + $0x10] sm:$0xff]
    %v1603 = vld [vmem:[%s7 + $0x18] sm:$0xff]
    %v1604 = vld [vmem:[%s8] sm:$0x1]
    %v1606 = vlaneseq
    %v1607 = vshrl.u32 %v1606, 7
    %v1608 = vsub.s32 0, %v1607
    %v1609 = vrot.slane %v1604, %v1608
    %v1612 = vsel %vm1525, %v1599, 0
    %1614 = vmatprep.subr.mxu0 0.0
    %1615 = vmatpush1.msra.mxu0 %v1600
    %1616 = vmatprep.subr.mxu0 0.0
    %1617 = vmatpush1.msra.mxu0 %v1601
    %1618 = vmatprep.subr.mxu0 0.0
    %1619 = vmatpush1.msra.mxu0 %v1602
    %1620 = vmatprep.subr.mxu0 0.0
    %1621 = vmatpush1.msra.mxu0 %v1603
    %1622 = vmatprep.subr.mxu0 0.0
    %1623 = vmatpush1.msra.mxu0 0.0
    %1624 = vmatprep.subr.mxu0 0.0
    %1625 = vmatpush1.msra.mxu0 0.0
    %1626 = vmatprep.subr.mxu0 0.0
    %1627 = vmatpush1.msra.mxu0 0.0
    %1628 = vmatprep.subr.mxu0 0.0
    %1629 = vmatpush1.msra.mxu0 0.0
    %1630 = vmatprep.subr.mxu0 0.0
    %1631 = vmatpush1.msra.mxu0 0.0
    %1632 = vmatprep.subr.mxu0 0.0
    %1633 = vmatpush1.msra.mxu0 0.0
    %1634 = vmatprep.subr.mxu0 0.0
    %1635 = vmatpush1.msra.mxu0 0.0
    %1636 = vmatprep.subr.mxu0 0.0
    %1637 = vmatpush1.msra.mxu0 0.0
    %1638 = vmatprep.subr.mxu0 0.0
    %1639 = vmatpush1.msra.mxu0 0.0
    %1640 = vmatprep.subr.mxu0 0.0
    %1641 = vmatpush1.msra.mxu0 0.0
    %1642 = vmatprep.subr.mxu0 0.0
    %1643 = vmatpush1.msra.mxu0 0.0
    %1644 = vmatprep.subr.mxu0 0.0
    %1645 = vmatpush1.msra.mxu0 0.0
    %1646 = vmatprep.subr.mxu0 0.0
    %1647 = vmatpush1.msra.mxu0 0.0
    %1648 = vmatprep.subr.mxu0 0.0
    %1649 = vmatpush1.msra.mxu0 0.0
    %1650 = vmatprep.subr.mxu0 0.0
    %1651 = vmatpush1.msra.mxu0 0.0
    %1652 = vmatprep.subr.mxu0 0.0
    %1653 = vmatpush1.msra.mxu0 0.0
    %1654 = vmatprep.subr.mxu0 0.0
    %1655 = vmatpush1.msra.mxu0 0.0
    %1656 = vmatprep.subr.mxu0 0.0
    %1657 = vmatpush1.msra.mxu0 0.0
    %1658 = vmatprep.subr.mxu0 0.0
    %1659 = vmatpush1.msra.mxu0 0.0
    %1660 = vmatprep.subr.mxu0 0.0
    %1661 = vmatpush1.msra.mxu0 0.0
    %1662 = vmatprep.subr.mxu0 0.0
    %1663 = vmatpush1.msra.mxu0 0.0
    %1664 = vmatprep.subr.mxu0 0.0
    %1665 = vmatpush1.msra.mxu0 0.0
    %1666 = vmatprep.subr.mxu0 0.0
    %1667 = vmatpush1.msra.mxu0 0.0
    %1668 = vmatprep.subr.mxu0 0.0
    %1669 = vmatpush1.msra.mxu0 0.0
    %1670 = vmatprep.subr.mxu0 0.0
    %1671 = vmatpush1.msra.mxu0 0.0
    %1672 = vmatprep.subr.mxu0 0.0
    %1673 = vmatpush1.msra.mxu0 0.0
    %1674 = vmatprep.subr.mxu0 0.0
    %1675 = vmatpush1.msra.mxu0 0.0
    %1676 = vmatprep.subr.mxu0 0.0
    %1677 = vmatpush1.msra.mxu0 0.0
    %1678 = vmatprep.mubr.f32.mxu0 0.0
    %1679 = vmatmul.mubr.f32.gmra.mrb[0].mxu0 %v1612
    %v1680 = vpop.f32.mrb[0].mxu0
    %v1681 = vadd.f32 %v1609, %v1680
    %v1682 = vpop.f32.mrb[0].mxu0
    %1683 = vdwg.mxu0
    %vm1684 = vcmask 254976
    %1685 = vst.msk [vmem:[%s10] sm:$0x3] %vm1684, %v1681
    %v1686 = vld [vmem:[%s9] sm:$0xff]
    %v1687 = vld [vmem:[%s9 + $0x8] sm:$0xff]
    %v1688 = vld [vmem:[%s9 + $0x10] sm:$0xff]
    %v1689 = vld [vmem:[%s9 + $0x18] sm:$0xff]
    %v1691 = vsel %vm1525, %v1681, 0
    %1693 = vmatprep.subr.mxu0 0.0
    %1694 = vmatpush1.msra.mxu0 %v1686
    %1695 = vmatprep.subr.mxu0 0.0
    %1696 = vmatpush1.msra.mxu0 %v1687
    %1697 = vmatprep.subr.mxu0 0.0
    %1698 = vmatpush1.msra.mxu0 %v1688
    %1699 = vmatprep.subr.mxu0 0.0
    %1700 = vmatpush1.msra.mxu0 %v1689
    %1701 = vmatprep.subr.mxu0 0.0
    %1702 = vmatpush1.msra.mxu0 0.0
    %1703 = vmatprep.subr.mxu0 0.0
    %1704 = vmatpush1.msra.mxu0 0.0
    %1705 = vmatprep.subr.mxu0 0.0
    %1706 = vmatpush1.msra.mxu0 0.0
    %1707 = vmatprep.subr.mxu0 0.0
    %1708 = vmatpush1.msra.mxu0 0.0
    %1709 = vmatprep.subr.mxu0 0.0
    %1710 = vmatpush1.msra.mxu0 0.0
    %1711 = vmatprep.subr.mxu0 0.0
    %1712 = vmatpush1.msra.mxu0 0.0
    %1713 = vmatprep.subr.mxu0 0.0
    %1714 = vmatpush1.msra.mxu0 0.0
    %1715 = vmatprep.subr.mxu0 0.0
    %1716 = vmatpush1.msra.mxu0 0.0
    %1717 = vmatprep.subr.mxu0 0.0
    %1718 = vmatpush1.msra.mxu0 0.0
    %1719 = vmatprep.subr.mxu0 0.0
    %1720 = vmatpush1.msra.mxu0 0.0
    %1721 = vmatprep.subr.mxu0 0.0
    %1722 = vmatpush1.msra.mxu0 0.0
    %1723 = vmatprep.subr.mxu0 0.0
    %1724 = vmatpush1.msra.mxu0 0.0
    %1725 = vmatprep.subr.mxu0 0.0
    %1726 = vmatpush1.msra.mxu0 0.0
    %1727 = vmatprep.subr.mxu0 0.0
    %1728 = vmatpush1.msra.mxu0 0.0
    %1729 = vmatprep.subr.mxu0 0.0
    %1730 = vmatpush1.msra.mxu0 0.0
    %1731 = vmatprep.subr.mxu0 0.0
    %1732 = vmatpush1.msra.mxu0 0.0
    %1733 = vmatprep.subr.mxu0 0.0
    %1734 = vmatpush1.msra.mxu0 0.0
    %1735 = vmatprep.subr.mxu0 0.0
    %1736 = vmatpush1.msra.mxu0 0.0
    %1737 = vmatprep.subr.mxu0 0.0
    %1738 = vmatpush1.msra.mxu0 0.0
    %1739 = vmatprep.subr.mxu0 0.0
    %1740 = vmatpush1.msra.mxu0 0.0
    %1741 = vmatprep.subr.mxu0 0.0
    %1742 = vmatpush1.msra.mxu0 0.0
    %1743 = vmatprep.subr.mxu0 0.0
    %1744 = vmatpush1.msra.mxu0 0.0
    %1745 = vmatprep.subr.mxu0 0.0
    %1746 = vmatpush1.msra.mxu0 0.0
    %1747 = vmatprep.subr.mxu0 0.0
    %1748 = vmatpush1.msra.mxu0 0.0
    %1749 = vmatprep.subr.mxu0 0.0
    %1750 = vmatpush1.msra.mxu0 0.0
    %1751 = vmatprep.subr.mxu0 0.0
    %1752 = vmatpush1.msra.mxu0 0.0
    %1753 = vmatprep.subr.mxu0 0.0
    %1754 = vmatpush1.msra.mxu0 0.0
    %1755 = vmatprep.subr.mxu0 0.0
    %1756 = vmatpush1.msra.mxu0 0.0
    %1757 = vmatprep.mubr.f32.mxu0 0.0
    %1758 = vmatmul.mubr.f32.gmra.mrb[0].mxu0 %v1691
    %v1759 = vpop.f32.mrb[0].mxu0
    %v1760 = vadd.f32 0.0, %v1759
    %v1761 = vpop.f32.mrb[0].mxu0
    %1762 = vdwg.mxu0
    %1764 = vrot.lane.b32.xlu0 %v1760, 124
    %v1765 = vpop.permute.xlu0 %1764
    %v1767 = vmax.f32 %v1760, %v1765
    %vm1768 = vcmask 25600
    %1769 = vst.msk [vmem:[#allocation2] sm:$0x3] %vm1768, %v1767
    // Predicated region
    $region42: #{dqn_forward.1} parent=1 // pred_check
      _
    $region43: #{dqn_forward.1} parent=1 // pred_check_branch
      %1771 = sbr.rel (0) target = $region45
    $region44: #{dqn_forward.1} parent=1 // pred_region
      _
    $region45: #{dqn_forward.1} parent=1 // pred_fallthru
      _
    // Predicated region
    $region46: #{dqn_forward.1} parent=1 // pred_check
      _
    $region47: #{dqn_forward.1} parent=1 // pred_check_branch
      %1773 = sbr.rel (0) target = $region49
    $region48: #{dqn_forward.1} parent=1 // pred_region
      %s1775 = ssub.s32 32, 32
      %1776 = vsyncadd [#allocation3], %s1775
      %s1778 = sshll.u32 [#allocation2], 4
      %s1779 = int_to_ptr.vmem [resolvable:$true] %s1778
      %1781 = dma.vmem_to_hbm [thread:$0]  %s1779, 32, %s11, [#allocation3]
    $region49: #{dqn_forward.1} parent=1 // pred_fallthru
      _
    // Predicated region
    $region50: #{dqn_forward.1} parent=1 // pred_check
      _
    $region51: #{dqn_forward.1} parent=1 // pred_check_branch
      %1783 = sbr.rel (0) target = $region53
    $region52: #{dqn_forward.1} parent=1 // pred_region
      _
    $region53: #{dqn_forward.1} parent=1 // pred_fallthru
      _
    // Predicated region
    $region54: #{dqn_forward.1} parent=1 // pred_check
      _
    $region55: #{dqn_forward.1} parent=1 // pred_check_branch
      %1785 = sbr.rel (0) target = $region57
    $region56: #{dqn_forward.1} parent=1 // pred_region
      %1786 = dma.done [#allocation3], 32
    $region57: #{dqn_forward.1} parent=1 // pred_fallthru
      _
    %1787 = vsyncpa [#allocation3], 1

</llo_original>
